<compile_context>
chip_gen: v7x
topology: tpu7x:2x2x1
jax: 0.10.0
libtpu: 0.0.40
codegen_flags: <defaults>
</compile_context>

<pallas_src>
import math

import jax
import jax.numpy as jnp
from jax.experimental import pallas as pl
from jax.experimental.pallas import tpu as pltpu

EPS = 1e-5
N_LAYERS = 8
PAD_IN = 128
PAD_OUT = 128
# vector-slab row indices (bias intentionally absent — it cancels in BN)
ROW_GAMMA, ROW_BETA, ROW_BOUND = 0, 1, 2

# Per layer: (weight-slab group, slot within group, K_pad, N_pad).
# Groups are keyed by padded (K, N) shape so each slab DMA is contiguous.
LAYER_PLAN = (
    ("sq",   0, 128, 128),   # linear1: input_size -> 100
    ("wide", 0, 128, 256),   # linear2: 100 -> 200
    ("tall", 0, 256, 128),   # linear3: 200 -> 100
    ("wide", 1, 128, 256),   # linear4: 100 -> 200
    ("tall", 1, 256, 128),   # linear5: 200 -> 100
    ("wide", 2, 128, 256),   # linear6: 100 -> 200
    ("tall", 2, 256, 128),   # linear7: 200 -> 100
    ("sq",   1, 128, 128),   # linear8: 100 -> output_size
)


def _mlp_kernel(x_ref, vec_ref, wsq_hbm, wwide_hbm, wtall_hbm, out_ref,
                wsq_buf, wwide_buf, wtall_buf, sq_sem, wide_sem, tall_sem):
    # x_ref   : (B, 128)        f32   zero-padded input (VMEM)
    # vec_ref : (8, 8, 256)     f32   rows: gamma / beta / bound (VMEM)
    # w*_hbm  : bf16 weight slabs left in HBM, DMA'd per layer below
    # out_ref : (B, 128)        f32   lane-dense padded output (VMEM)
    hbm = {"sq": wsq_hbm, "wide": wwide_hbm, "tall": wtall_hbm}
    buf = {"sq": wsq_buf, "wide": wwide_buf, "tall": wtall_buf}
    sem = {"sq": sq_sem, "wide": wide_sem, "tall": tall_sem}

    def weight_copy(layer):
        g, s, _, _ = LAYER_PLAN[layer]
        return pltpu.make_async_copy(hbm[g].at[s], buf[g].at[s], sem[g].at[s])

    # Prefetch chain: kick off every per-layer weight DMA up front, in use
    # order.  Layer 0's 32 KiB tile lands almost immediately; later layers
    # stream in behind the MXU, hiding the weight traffic under compute.
    for i in range(N_LAYERS):
        weight_copy(i).start()

    inv_b = jnp.float32(1.0 / x_ref.shape[0])

    def bn(z, gamma, beta):
        # Training-mode BatchNorm1d (biased variance, eps=1e-5), one-pass:
        # sum(z) and sum(z*z) are independent reductions -> shorter chain.
        s1 = jnp.sum(z, axis=0, keepdims=True)
        s2 = jnp.sum(z * z, axis=0, keepdims=True)
        mean = s1 * inv_b
        var = jnp.maximum(s2 * inv_b - mean * mean, 0.0)
        scale = jax.lax.rsqrt(var + EPS) * gamma          # rsqrt -> EUP
        shift = beta - mean * scale
        return z * scale + shift

    def layer(h, i):
        g, s, _, npad = LAYER_PLAN[i]
        weight_copy(i).wait()
        # NOTE: the Linear bias (0.01) is dropped on purpose — a per-feature
        # constant cancels exactly when the batch mean is subtracted in
        # training-mode BN, so it can never reach the output.
        z = jnp.dot(h.astype(jnp.bfloat16), buf[g][s],
                    preferred_element_type=jnp.float32)
        vecs = vec_ref[i]                                 # (8, 256) f32
        return bn(z,
                  vecs[ROW_GAMMA:ROW_GAMMA + 1, :npad],
                  vecs[ROW_BETA:ROW_BETA + 1, :npad])

    def layer_relu(h, i):
        return jnp.maximum(layer(h, i), 0.0)

    x = x_ref[...]
    h = layer_relu(x, 0)                            # linear1 / bn1 / relu
    x1 = layer_relu(layer_relu(h, 1), 2) + h        # block 1 + residual
    x2 = layer_relu(layer_relu(x1, 3), 4) + x1      # block 2 + residual
    x3 = layer_relu(layer_relu(x2, 5), 6) + x2      # block 3 + residual
    z = layer(x3, 7)                                # linear8 / bn8
    bound = vec_ref[N_LAYERS - 1][ROW_BOUND:ROW_BOUND + 1, :PAD_OUT]
    out_ref[...] = jnp.tanh(z) * bound


def init_params(key, input_size, output_size):
    """Packed parameter slabs matching the PyTorch init (kaiming-uniform for
    the ReLU layers, xavier-uniform gain=5/3 for the tanh head, BN gamma=1 /
    beta=0).  Also returns the raw unpadded f32 weights for the reference."""
    assert output_size % 2 == 0
    assert input_size <= 128 and output_size <= 128
    dims = [input_size, 100, 200, 100, 200, 100, 200, 100, output_size]

    slabs = {
        "sq":   jnp.zeros((2, 128, 128), jnp.float32),
        "wide": jnp.zeros((3, 128, 256), jnp.float32),
        "tall": jnp.zeros((3, 256, 128), jnp.float32),
    }
    vec_slab = jnp.zeros((N_LAYERS, 8, 256), jnp.float32)

    raw_w = []
    keys = jax.random.split(key, N_LAYERS)
    for i, (g, s, _, _) in enumerate(LAYER_PLAN):
        fan_in, fan_out = dims[i], dims[i + 1]
        if i < N_LAYERS - 1:                       # kaiming_uniform_, relu
            bound = math.sqrt(2.0) * math.sqrt(3.0 / fan_in)
        else:                                      # xavier_uniform_, gain=5/3
            bound = (5.0 / 3.0) * math.sqrt(6.0 / (fan_in + fan_out))
        w = jax.random.uniform(keys[i], (fan_in, fan_out), jnp.float32,
                               minval=-bound, maxval=bound)
        raw_w.append(w)
        slabs[g] = slabs[g].at[s, :fan_in, :fan_out].set(w)   # stored (in, out)
        vec_slab = vec_slab.at[i, ROW_GAMMA, :fan_out].set(1.0)
        # BN beta stays 0; padded columns keep gamma=0 so they stay exactly 0.
        # The Linear bias (0.01) is not packed — it cancels in training-mode BN.

    bound_vec = jnp.tile(jnp.array([1.0, 0.8], jnp.float32), output_size // 2)
    vec_slab = vec_slab.at[N_LAYERS - 1, ROW_BOUND, :output_size].set(bound_vec)

    packed = (slabs["sq"].astype(jnp.bfloat16),
              slabs["wide"].astype(jnp.bfloat16),
              slabs["tall"].astype(jnp.bfloat16),
              vec_slab)
    return packed, raw_w


def _vmem_capacity_bytes(default=64 * 1024 * 1024):
    try:
        info = pltpu.get_tpu_info()
        return int(getattr(info, "vmem_capacity_bytes", default))
    except Exception:
        return default


def large_neuron_network(x, params, output_size):
    w_sq, w_wide, w_tall, vec_slab = params
    batch, in_f = x.shape
    assert batch >= 2, "training-mode BatchNorm1d needs batch >= 2"
    assert in_f <= PAD_IN
    x_pad = jnp.pad(x.astype(jnp.float32), ((0, 0), (0, PAD_IN - in_f)))

    weight_bytes = (w_sq.size + w_wide.size + w_tall.size) * 2
    vec_bytes = vec_slab.size * 4
    io_bytes = 2 * batch * 128 * 4
    act_bytes = 10 * batch * 256 * 4               # resident activations (upper bound)
    live_bytes = weight_bytes + vec_bytes + io_bytes + act_bytes

    # Generation-aware scoped-VMEM budget: never request more than ~75% of
    # physical VMEM (v7x: 64 MiB/TC) so the compiler keeps headroom for its
    # internal scratch; on v5e/v6e (128 MiB) the cap is correspondingly higher.
    budget_cap = int(0.75 * _vmem_capacity_bytes())
    wanted = 2 * live_bytes + (8 << 20)
    vmem_limit = int(min(budget_cap, max(32 * 1024 * 1024, wanted)))
    if wanted > budget_cap:
        # TODO(synk): batch-tiled grid with two-pass BN (per-feature sum/sumsq
        # accumulated in resident VMEM scratch, then a normalize pass) so very
        # large batches fit VMEM and the grid shards across both v7x TensorCores.
        raise NotImplementedError("batch too large for whole-batch-resident BN path")

    flops = 2 * batch * sum(k * n for _, _, k, n in LAYER_PLAN) \
        + 20 * batch * 256 * N_LAYERS
    cost = pl.CostEstimate(
        flops=flops,
        transcendentals=batch * PAD_OUT + N_LAYERS * 256,   # tanh + rsqrt
        bytes_accessed=weight_bytes + vec_bytes + io_bytes,
    )

    out_pad = pl.pallas_call(
        _mlp_kernel,
        out_shape=jax.ShapeDtypeStruct((batch, PAD_OUT), jnp.float32),
        in_specs=[
            pl.BlockSpec(memory_space=pltpu.MemorySpace.VMEM),   # x (padded)
            pl.BlockSpec(memory_space=pltpu.MemorySpace.VMEM),   # gamma/beta/bound
            pl.BlockSpec(memory_space=pl.ANY),                   # weights stay in
            pl.BlockSpec(memory_space=pl.ANY),                   #  HBM, DMA'd per
            pl.BlockSpec(memory_space=pl.ANY),                   #  layer (overlapped)
        ],
        out_specs=pl.BlockSpec(memory_space=pltpu.MemorySpace.VMEM),
        scratch_shapes=[
            pltpu.VMEM((2, 128, 128), jnp.bfloat16),
            pltpu.VMEM((3, 128, 256), jnp.bfloat16),
            pltpu.VMEM((3, 256, 128), jnp.bfloat16),
            pltpu.SemaphoreType.DMA((2,)),
            pltpu.SemaphoreType.DMA((3,)),
            pltpu.SemaphoreType.DMA((3,)),
        ],
        compiler_params=pltpu.CompilerParams(vmem_limit_bytes=vmem_limit),
        cost_estimate=cost,
    )(x_pad, vec_slab, w_sq, w_wide, w_tall)

    return out_pad[:, :output_size]


def reference_forward(x, raw_w, output_size, *, bf16_matmul):
    """Pure-JAX reference with faithful PyTorch forward semantics (Linear bias
    included, two-pass training-mode BN).  bf16_matmul=True mirrors the
    kernel's numerics policy; False is the true-f32 PyTorch path."""
    bound = jnp.tile(jnp.array([1.0, 0.8], jnp.float32), output_size // 2)

    def dot(h, w):
        if bf16_matmul:
            return jnp.dot(h.astype(jnp.bfloat16), w.astype(jnp.bfloat16),
                           preferred_element_type=jnp.float32)
        return jnp.dot(h, w, precision=jax.lax.Precision.HIGHEST)

    def bn(z):
        m = jnp.mean(z, axis=0, keepdims=True)
        v = jnp.mean((z - m) ** 2, axis=0, keepdims=True)
        return (z - m) * jax.lax.rsqrt(v + EPS)

    def lbr(h, i):
        return jnp.maximum(bn(dot(h, raw_w[i]) + 0.01), 0.0)

    h = lbr(x.astype(jnp.float32), 0)
    x1 = lbr(lbr(h, 1), 2) + h
    x2 = lbr(lbr(x1, 3), 4) + x1
    x3 = lbr(lbr(x2, 5), 6) + x2
    z = bn(dot(x3, raw_w[7]) + 0.01)
    return jnp.tanh(z) * bound


if __name__ == "__main__":
    key = jax.random.PRNGKey(0)
    k_x, k_p = jax.random.split(key)

    input_size, output_size, batch = 16, 4, 8
    x = jax.random.normal(k_x, (batch, input_size), jnp.float32)
    packed, raw_w = init_params(k_p, input_size, output_size)

    out = large_neuron_network(x, packed, output_size)
    out = jax.block_until_ready(out)
    assert out.shape == (batch, output_size)

    # (1) Tight check vs a reference sharing the kernel's numerics policy
    #     (bf16 into the MXU, f32 accumulation).  The reference keeps the
    #     Linear bias and the two-pass BN, so this also validates that the
    #     bias removal and one-pass BN are mathematically neutral.
    ref_bf16 = reference_forward(x, raw_w, output_size, bf16_matmul=True)
    assert jnp.allclose(out, ref_bf16, atol=5e-3, rtol=5e-3), (out, ref_bf16)

    # (2) Loose check vs faithful f32 PyTorch semantics — bounds the bf16
    #     weight-quantization drift on the tanh-bounded outputs.
    ref_f32 = reference_forward(x, raw_w, output_size, bf16_matmul=False)
    assert jnp.allclose(out, ref_f32, atol=1e-1, rtol=1e-1), (out, ref_f32)

    print("KERNEL_OK")
</pallas_src>

<mosaic_0001>
module attributes {stable_mosaic.version = 11 : i64} {
  func.func @_mlp_kernel(%arg0: memref<8x128xf32, #tpu.memory_space<vmem>>, %arg1: memref<8x8x256xf32, #tpu.memory_space<vmem>>, %arg2: memref<2x128x128xbf16, #tpu.memory_space<any>>, %arg3: memref<3x128x256xbf16, #tpu.memory_space<any>>, %arg4: memref<3x256x128xbf16, #tpu.memory_space<any>>, %arg5: memref<8x128xf32, #tpu.memory_space<vmem>>, %arg6: memref<2x128x128xbf16, #tpu.memory_space<vmem>>, %arg7: memref<3x128x256xbf16, #tpu.memory_space<vmem>>, %arg8: memref<3x256x128xbf16, #tpu.memory_space<vmem>>, %arg9: memref<2x!tpu.dma_semaphore, #tpu.memory_space<semaphore_mem>>, %arg10: memref<3x!tpu.dma_semaphore, #tpu.memory_space<semaphore_mem>>, %arg11: memref<3x!tpu.dma_semaphore, #tpu.memory_space<semaphore_mem>>) attributes {dimension_semantics = [], scalar_prefetch = 0 : i64, scratch_operands = 6 : i64, tpu.core_type = #tpu.core_type<tc>} {
    %c0_i32 = arith.constant 0 : i32
    %c0_i32_0 = arith.constant 0 : i32
    %c0_i32_1 = arith.constant 0 : i32
    %c0_i32_2 = arith.constant 0 : i32
    %c0_i32_3 = arith.constant 0 : i32
    %0 = tpu.memref_slice %arg2[%c0_i32, %c0_i32_2, %c0_i32_3] : memref<2x128x128xbf16, #tpu.memory_space<any>> -> memref<1x128x128xbf16, #tpu.memory_space<any>>
    %1 = tpu.memref_squeeze %0 : memref<1x128x128xbf16, #tpu.memory_space<any>> -> memref<128x128xbf16, #tpu.memory_space<any>>
    %c0_i32_4 = arith.constant 0 : i32
    %c0_i32_5 = arith.constant 0 : i32
    %2 = tpu.memref_slice %arg6[%c0_i32_0, %c0_i32_4, %c0_i32_5] : memref<2x128x128xbf16, #tpu.memory_space<vmem>> -> memref<1x128x128xbf16, #tpu.memory_space<vmem>>
    %3 = tpu.memref_squeeze %2 : memref<1x128x128xbf16, #tpu.memory_space<vmem>> -> memref<128x128xbf16, #tpu.memory_space<vmem>>
    %4 = tpu.memref_slice %arg9[%c0_i32_1] : memref<2x!tpu.dma_semaphore, #tpu.memory_space<semaphore_mem>> -> memref<1x!tpu.dma_semaphore, #tpu.memory_space<semaphore_mem>>
    %5 = tpu.memref_squeeze %4 : memref<1x!tpu.dma_semaphore, #tpu.memory_space<semaphore_mem>> -> memref<!tpu.dma_semaphore, #tpu.memory_space<semaphore_mem>>
    tpu.enqueue_dma source(%1 : memref<128x128xbf16, #tpu.memory_space<any>>) target(%3 : memref<128x128xbf16, #tpu.memory_space<vmem>>) target_semaphore(%5 : memref<!tpu.dma_semaphore, #tpu.memory_space<semaphore_mem>>)
    %c0_i32_6 = arith.constant 0 : i32
    %c0_i32_7 = arith.constant 0 : i32
    %c0_i32_8 = arith.constant 0 : i32
    %c0_i32_9 = arith.constant 0 : i32
    %c0_i32_10 = arith.constant 0 : i32
    %6 = tpu.memref_slice %arg3[%c0_i32_6, %c0_i32_9, %c0_i32_10] : memref<3x128x256xbf16, #tpu.memory_space<any>> -> memref<1x128x256xbf16, #tpu.memory_space<any>>
    %7 = tpu.memref_squeeze %6 : memref<1x128x256xbf16, #tpu.memory_space<any>> -> memref<128x256xbf16, #tpu.memory_space<any>>
    %c0_i32_11 = arith.constant 0 : i32
    %c0_i32_12 = arith.constant 0 : i32
    %8 = tpu.memref_slice %arg7[%c0_i32_7, %c0_i32_11, %c0_i32_12] : memref<3x128x256xbf16, #tpu.memory_space<vmem>> -> memref<1x128x256xbf16, #tpu.memory_space<vmem>>
    %9 = tpu.memref_squeeze %8 : memref<1x128x256xbf16, #tpu.memory_space<vmem>> -> memref<128x256xbf16, #tpu.memory_space<vmem>>
    %10 = tpu.memref_slice %arg10[%c0_i32_8] : memref<3x!tpu.dma_semaphore, #tpu.memory_space<semaphore_mem>> -> memref<1x!tpu.dma_semaphore, #tpu.memory_space<semaphore_mem>>
    %11 = tpu.memref_squeeze %10 : memref<1x!tpu.dma_semaphore, #tpu.memory_space<semaphore_mem>> -> memref<!tpu.dma_semaphore, #tpu.memory_space<semaphore_mem>>
    tpu.enqueue_dma source(%7 : memref<128x256xbf16, #tpu.memory_space<any>>) target(%9 : memref<128x256xbf16, #tpu.memory_space<vmem>>) target_semaphore(%11 : memref<!tpu.dma_semaphore, #tpu.memory_space<semaphore_mem>>)
    %c0_i32_13 = arith.constant 0 : i32
    %c0_i32_14 = arith.constant 0 : i32
    %c0_i32_15 = arith.constant 0 : i32
    %c0_i32_16 = arith.constant 0 : i32
    %c0_i32_17 = arith.constant 0 : i32
    %12 = tpu.memref_slice %arg4[%c0_i32_13, %c0_i32_16, %c0_i32_17] : memref<3x256x128xbf16, #tpu.memory_space<any>> -> memref<1x256x128xbf16, #tpu.memory_space<any>>
    %13 = tpu.memref_squeeze %12 : memref<1x256x128xbf16, #tpu.memory_space<any>> -> memref<256x128xbf16, #tpu.memory_space<any>>
    %c0_i32_18 = arith.constant 0 : i32
    %c0_i32_19 = arith.constant 0 : i32
    %14 = tpu.memref_slice %arg8[%c0_i32_14, %c0_i32_18, %c0_i32_19] : memref<3x256x128xbf16, #tpu.memory_space<vmem>> -> memref<1x256x128xbf16, #tpu.memory_space<vmem>>
    %15 = tpu.memref_squeeze %14 : memref<1x256x128xbf16, #tpu.memory_space<vmem>> -> memref<256x128xbf16, #tpu.memory_space<vmem>>
    %16 = tpu.memref_slice %arg11[%c0_i32_15] : memref<3x!tpu.dma_semaphore, #tpu.memory_space<semaphore_mem>> -> memref<1x!tpu.dma_semaphore, #tpu.memory_space<semaphore_mem>>
    %17 = tpu.memref_squeeze %16 : memref<1x!tpu.dma_semaphore, #tpu.memory_space<semaphore_mem>> -> memref<!tpu.dma_semaphore, #tpu.memory_space<semaphore_mem>>
    tpu.enqueue_dma source(%13 : memref<256x128xbf16, #tpu.memory_space<any>>) target(%15 : memref<256x128xbf16, #tpu.memory_space<vmem>>) target_semaphore(%17 : memref<!tpu.dma_semaphore, #tpu.memory_space<semaphore_mem>>)
    %c1_i32 = arith.constant 1 : i32
    %c1_i32_20 = arith.constant 1 : i32
    %c1_i32_21 = arith.constant 1 : i32
    %c0_i32_22 = arith.constant 0 : i32
    %c0_i32_23 = arith.constant 0 : i32
    %18 = tpu.memref_slice %arg3[%c1_i32, %c0_i32_22, %c0_i32_23] : memref<3x128x256xbf16, #tpu.memory_space<any>> -> memref<1x128x256xbf16, #tpu.memory_space<any>>
    %19 = tpu.memref_squeeze %18 : memref<1x128x256xbf16, #tpu.memory_space<any>> -> memref<128x256xbf16, #tpu.memory_space<any>>
    %c0_i32_24 = arith.constant 0 : i32
    %c0_i32_25 = arith.constant 0 : i32
    %20 = tpu.memref_slice %arg7[%c1_i32_20, %c0_i32_24, %c0_i32_25] : memref<3x128x256xbf16, #tpu.memory_space<vmem>> -> memref<1x128x256xbf16, #tpu.memory_space<vmem>>
    %21 = tpu.memref_squeeze %20 : memref<1x128x256xbf16, #tpu.memory_space<vmem>> -> memref<128x256xbf16, #tpu.memory_space<vmem>>
    %22 = tpu.memref_slice %arg10[%c1_i32_21] : memref<3x!tpu.dma_semaphore, #tpu.memory_space<semaphore_mem>> -> memref<1x!tpu.dma_semaphore, #tpu.memory_space<semaphore_mem>>
    %23 = tpu.memref_squeeze %22 : memref<1x!tpu.dma_semaphore, #tpu.memory_space<semaphore_mem>> -> memref<!tpu.dma_semaphore, #tpu.memory_space<semaphore_mem>>
    tpu.enqueue_dma source(%19 : memref<128x256xbf16, #tpu.memory_space<any>>) target(%21 : memref<128x256xbf16, #tpu.memory_space<vmem>>) target_semaphore(%23 : memref<!tpu.dma_semaphore, #tpu.memory_space<semaphore_mem>>)
    %c1_i32_26 = arith.constant 1 : i32
    %c1_i32_27 = arith.constant 1 : i32
    %c1_i32_28 = arith.constant 1 : i32
    %c0_i32_29 = arith.constant 0 : i32
    %c0_i32_30 = arith.constant 0 : i32
    %24 = tpu.memref_slice %arg4[%c1_i32_26, %c0_i32_29, %c0_i32_30] : memref<3x256x128xbf16, #tpu.memory_space<any>> -> memref<1x256x128xbf16, #tpu.memory_space<any>>
    %25 = tpu.memref_squeeze %24 : memref<1x256x128xbf16, #tpu.memory_space<any>> -> memref<256x128xbf16, #tpu.memory_space<any>>
    %c0_i32_31 = arith.constant 0 : i32
    %c0_i32_32 = arith.constant 0 : i32
    %26 = tpu.memref_slice %arg8[%c1_i32_27, %c0_i32_31, %c0_i32_32] : memref<3x256x128xbf16, #tpu.memory_space<vmem>> -> memref<1x256x128xbf16, #tpu.memory_space<vmem>>
    %27 = tpu.memref_squeeze %26 : memref<1x256x128xbf16, #tpu.memory_space<vmem>> -> memref<256x128xbf16, #tpu.memory_space<vmem>>
    %28 = tpu.memref_slice %arg11[%c1_i32_28] : memref<3x!tpu.dma_semaphore, #tpu.memory_space<semaphore_mem>> -> memref<1x!tpu.dma_semaphore, #tpu.memory_space<semaphore_mem>>
    %29 = tpu.memref_squeeze %28 : memref<1x!tpu.dma_semaphore, #tpu.memory_space<semaphore_mem>> -> memref<!tpu.dma_semaphore, #tpu.memory_space<semaphore_mem>>
    tpu.enqueue_dma source(%25 : memref<256x128xbf16, #tpu.memory_space<any>>) target(%27 : memref<256x128xbf16, #tpu.memory_space<vmem>>) target_semaphore(%29 : memref<!tpu.dma_semaphore, #tpu.memory_space<semaphore_mem>>)
    %c2_i32 = arith.constant 2 : i32
    %c2_i32_33 = arith.constant 2 : i32
    %c2_i32_34 = arith.constant 2 : i32
    %c0_i32_35 = arith.constant 0 : i32
    %c0_i32_36 = arith.constant 0 : i32
    %30 = tpu.memref_slice %arg3[%c2_i32, %c0_i32_35, %c0_i32_36] : memref<3x128x256xbf16, #tpu.memory_space<any>> -> memref<1x128x256xbf16, #tpu.memory_space<any>>
    %31 = tpu.memref_squeeze %30 : memref<1x128x256xbf16, #tpu.memory_space<any>> -> memref<128x256xbf16, #tpu.memory_space<any>>
    %c0_i32_37 = arith.constant 0 : i32
    %c0_i32_38 = arith.constant 0 : i32
    %32 = tpu.memref_slice %arg7[%c2_i32_33, %c0_i32_37, %c0_i32_38] : memref<3x128x256xbf16, #tpu.memory_space<vmem>> -> memref<1x128x256xbf16, #tpu.memory_space<vmem>>
    %33 = tpu.memref_squeeze %32 : memref<1x128x256xbf16, #tpu.memory_space<vmem>> -> memref<128x256xbf16, #tpu.memory_space<vmem>>
    %34 = tpu.memref_slice %arg10[%c2_i32_34] : memref<3x!tpu.dma_semaphore, #tpu.memory_space<semaphore_mem>> -> memref<1x!tpu.dma_semaphore, #tpu.memory_space<semaphore_mem>>
    %35 = tpu.memref_squeeze %34 : memref<1x!tpu.dma_semaphore, #tpu.memory_space<semaphore_mem>> -> memref<!tpu.dma_semaphore, #tpu.memory_space<semaphore_mem>>
    tpu.enqueue_dma source(%31 : memref<128x256xbf16, #tpu.memory_space<any>>) target(%33 : memref<128x256xbf16, #tpu.memory_space<vmem>>) target_semaphore(%35 : memref<!tpu.dma_semaphore, #tpu.memory_space<semaphore_mem>>)
    %c2_i32_39 = arith.constant 2 : i32
    %c2_i32_40 = arith.constant 2 : i32
    %c2_i32_41 = arith.constant 2 : i32
    %c0_i32_42 = arith.constant 0 : i32
    %c0_i32_43 = arith.constant 0 : i32
    %36 = tpu.memref_slice %arg4[%c2_i32_39, %c0_i32_42, %c0_i32_43] : memref<3x256x128xbf16, #tpu.memory_space<any>> -> memref<1x256x128xbf16, #tpu.memory_space<any>>
    %37 = tpu.memref_squeeze %36 : memref<1x256x128xbf16, #tpu.memory_space<any>> -> memref<256x128xbf16, #tpu.memory_space<any>>
    %c0_i32_44 = arith.constant 0 : i32
    %c0_i32_45 = arith.constant 0 : i32
    %38 = tpu.memref_slice %arg8[%c2_i32_40, %c0_i32_44, %c0_i32_45] : memref<3x256x128xbf16, #tpu.memory_space<vmem>> -> memref<1x256x128xbf16, #tpu.memory_space<vmem>>
    %39 = tpu.memref_squeeze %38 : memref<1x256x128xbf16, #tpu.memory_space<vmem>> -> memref<256x128xbf16, #tpu.memory_space<vmem>>
    %40 = tpu.memref_slice %arg11[%c2_i32_41] : memref<3x!tpu.dma_semaphore, #tpu.memory_space<semaphore_mem>> -> memref<1x!tpu.dma_semaphore, #tpu.memory_space<semaphore_mem>>
    %41 = tpu.memref_squeeze %40 : memref<1x!tpu.dma_semaphore, #tpu.memory_space<semaphore_mem>> -> memref<!tpu.dma_semaphore, #tpu.memory_space<semaphore_mem>>
    tpu.enqueue_dma source(%37 : memref<256x128xbf16, #tpu.memory_space<any>>) target(%39 : memref<256x128xbf16, #tpu.memory_space<vmem>>) target_semaphore(%41 : memref<!tpu.dma_semaphore, #tpu.memory_space<semaphore_mem>>)
    %c1_i32_46 = arith.constant 1 : i32
    %c1_i32_47 = arith.constant 1 : i32
    %c1_i32_48 = arith.constant 1 : i32
    %c0_i32_49 = arith.constant 0 : i32
    %c0_i32_50 = arith.constant 0 : i32
    %42 = tpu.memref_slice %arg2[%c1_i32_46, %c0_i32_49, %c0_i32_50] : memref<2x128x128xbf16, #tpu.memory_space<any>> -> memref<1x128x128xbf16, #tpu.memory_space<any>>
    %43 = tpu.memref_squeeze %42 : memref<1x128x128xbf16, #tpu.memory_space<any>> -> memref<128x128xbf16, #tpu.memory_space<any>>
    %c0_i32_51 = arith.constant 0 : i32
    %c0_i32_52 = arith.constant 0 : i32
    %44 = tpu.memref_slice %arg6[%c1_i32_47, %c0_i32_51, %c0_i32_52] : memref<2x128x128xbf16, #tpu.memory_space<vmem>> -> memref<1x128x128xbf16, #tpu.memory_space<vmem>>
    %45 = tpu.memref_squeeze %44 : memref<1x128x128xbf16, #tpu.memory_space<vmem>> -> memref<128x128xbf16, #tpu.memory_space<vmem>>
    %46 = tpu.memref_slice %arg9[%c1_i32_48] : memref<2x!tpu.dma_semaphore, #tpu.memory_space<semaphore_mem>> -> memref<1x!tpu.dma_semaphore, #tpu.memory_space<semaphore_mem>>
    %47 = tpu.memref_squeeze %46 : memref<1x!tpu.dma_semaphore, #tpu.memory_space<semaphore_mem>> -> memref<!tpu.dma_semaphore, #tpu.memory_space<semaphore_mem>>
    tpu.enqueue_dma source(%43 : memref<128x128xbf16, #tpu.memory_space<any>>) target(%45 : memref<128x128xbf16, #tpu.memory_space<vmem>>) target_semaphore(%47 : memref<!tpu.dma_semaphore, #tpu.memory_space<semaphore_mem>>)
    %c0 = arith.constant 0 : index
    %c0_53 = arith.constant 0 : index
    %48 = vector.load %arg0[%c0, %c0_53] : memref<8x128xf32, #tpu.memory_space<vmem>>, vector<8x128xf32>
    %c0_i32_54 = arith.constant 0 : i32
    %c0_i32_55 = arith.constant 0 : i32
    %c0_i32_56 = arith.constant 0 : i32
    %c0_i32_57 = arith.constant 0 : i32
    %c0_i32_58 = arith.constant 0 : i32
    %49 = tpu.memref_slice %arg2[%c0_i32_54, %c0_i32_57, %c0_i32_58] : memref<2x128x128xbf16, #tpu.memory_space<any>> -> memref<1x128x128xbf16, #tpu.memory_space<any>>
    %50 = tpu.memref_squeeze %49 : memref<1x128x128xbf16, #tpu.memory_space<any>> -> memref<128x128xbf16, #tpu.memory_space<any>>
    %c0_i32_59 = arith.constant 0 : i32
    %c0_i32_60 = arith.constant 0 : i32
    %51 = tpu.memref_slice %arg6[%c0_i32_55, %c0_i32_59, %c0_i32_60] : memref<2x128x128xbf16, #tpu.memory_space<vmem>> -> memref<1x128x128xbf16, #tpu.memory_space<vmem>>
    %52 = tpu.memref_squeeze %51 : memref<1x128x128xbf16, #tpu.memory_space<vmem>> -> memref<128x128xbf16, #tpu.memory_space<vmem>>
    %53 = tpu.memref_slice %arg9[%c0_i32_56] : memref<2x!tpu.dma_semaphore, #tpu.memory_space<semaphore_mem>> -> memref<1x!tpu.dma_semaphore, #tpu.memory_space<semaphore_mem>>
    %54 = tpu.memref_squeeze %53 : memref<1x!tpu.dma_semaphore, #tpu.memory_space<semaphore_mem>> -> memref<!tpu.dma_semaphore, #tpu.memory_space<semaphore_mem>>
    tpu.wait_dma2 semaphore(%54 : memref<!tpu.dma_semaphore, #tpu.memory_space<semaphore_mem>>) src(%50 : memref<128x128xbf16, #tpu.memory_space<any>>) dst(%52 : memref<128x128xbf16, #tpu.memory_space<vmem>>)
    %55 = arith.truncf %48 : vector<8x128xf32> to vector<8x128xbf16>
    %c0_61 = arith.constant 0 : index
    %c0_62 = arith.constant 0 : index
    %c0_63 = arith.constant 0 : index
    %56 = vector.load %arg6[%c0_61, %c0_62, %c0_63] : memref<2x128x128xbf16, #tpu.memory_space<vmem>>, vector<1x128x128xbf16>
    %57 = vector.shape_cast %56 : vector<1x128x128xbf16> to vector<128x128xbf16>
    %cst = arith.constant dense<0.000000e+00> : vector<8x128xf32>
    %58 = tpu.matmul %55, %57, %cst {dimension_numbers = #tpu.dot_dimension_numbers<[1], [0], [0], [1], [0, 0, 1, 1], [], []>} : vector<8x128xbf16>, vector<128x128xbf16>, vector<8x128xf32> -> vector<8x128xf32>
    %c0_64 = arith.constant 0 : index
    %c0_65 = arith.constant 0 : index
    %c0_66 = arith.constant 0 : index
    %59 = vector.load %arg1[%c0_64, %c0_65, %c0_66] : memref<8x8x256xf32, #tpu.memory_space<vmem>>, vector<1x8x256xf32>
    %60 = vector.shape_cast %59 : vector<1x8x256xf32> to vector<8x256xf32>
    %61 = vector.extract_strided_slice %60 {offsets = [0, 0], sizes = [1, 128], strides = [1, 1]} : vector<8x256xf32> to vector<1x128xf32>
    %62 = vector.extract_strided_slice %60 {offsets = [1, 0], sizes = [1, 128], strides = [1, 1]} : vector<8x256xf32> to vector<1x128xf32>
    %cst_67 = arith.constant dense<0.000000e+00> : vector<128xf32>
    %63 = vector.multi_reduction <add>, %58, %cst_67 [0] : vector<8x128xf32> to vector<128xf32>
    %64 = vector.shape_cast %63 : vector<128xf32> to vector<1x128xf32>
    %65 = arith.mulf %58, %58 : vector<8x128xf32>
    %cst_68 = arith.constant dense<0.000000e+00> : vector<128xf32>
    %66 = vector.multi_reduction <add>, %65, %cst_68 [0] : vector<8x128xf32> to vector<128xf32>
    %67 = vector.shape_cast %66 : vector<128xf32> to vector<1x128xf32>
    %cst_69 = arith.constant 1.250000e-01 : f32
    %68 = vector.broadcast %cst_69 : f32 to vector<1x128xf32>
    %69 = arith.mulf %64, %68 : vector<1x128xf32>
    %cst_70 = arith.constant 1.250000e-01 : f32
    %70 = vector.broadcast %cst_70 : f32 to vector<1x128xf32>
    %71 = arith.mulf %67, %70 : vector<1x128xf32>
    %72 = arith.mulf %69, %69 : vector<1x128xf32>
    %73 = arith.subf %71, %72 : vector<1x128xf32>
    %cst_71 = arith.constant 0.000000e+00 : f32
    %74 = vector.broadcast %cst_71 : f32 to vector<1x128xf32>
    %75 = arith.maximumf %73, %74 : vector<1x128xf32>
    %cst_72 = arith.constant 9.99999974E-6 : f32
    %76 = vector.broadcast %cst_72 : f32 to vector<1x128xf32>
    %77 = arith.addf %75, %76 : vector<1x128xf32>
    %78 = math.rsqrt %77 : vector<1x128xf32>
    %79 = arith.mulf %78, %61 : vector<1x128xf32>
    %80 = arith.mulf %69, %79 : vector<1x128xf32>
    %81 = arith.subf %62, %80 : vector<1x128xf32>
    %82 = vector.broadcast %79 : vector<1x128xf32> to vector<8x128xf32>
    %83 = arith.mulf %58, %82 : vector<8x128xf32>
    %84 = vector.broadcast %81 : vector<1x128xf32> to vector<8x128xf32>
    %85 = arith.addf %83, %84 : vector<8x128xf32>
    %cst_73 = arith.constant 0.000000e+00 : f32
    %86 = vector.broadcast %cst_73 : f32 to vector<8x128xf32>
    %87 = arith.maximumf %85, %86 : vector<8x128xf32>
    %c0_i32_74 = arith.constant 0 : i32
    %c0_i32_75 = arith.constant 0 : i32
    %c0_i32_76 = arith.constant 0 : i32
    %c0_i32_77 = arith.constant 0 : i32
    %c0_i32_78 = arith.constant 0 : i32
    %88 = tpu.memref_slice %arg3[%c0_i32_74, %c0_i32_77, %c0_i32_78] : memref<3x128x256xbf16, #tpu.memory_space<any>> -> memref<1x128x256xbf16, #tpu.memory_space<any>>
    %89 = tpu.memref_squeeze %88 : memref<1x128x256xbf16, #tpu.memory_space<any>> -> memref<128x256xbf16, #tpu.memory_space<any>>
    %c0_i32_79 = arith.constant 0 : i32
    %c0_i32_80 = arith.constant 0 : i32
    %90 = tpu.memref_slice %arg7[%c0_i32_75, %c0_i32_79, %c0_i32_80] : memref<3x128x256xbf16, #tpu.memory_space<vmem>> -> memref<1x128x256xbf16, #tpu.memory_space<vmem>>
    %91 = tpu.memref_squeeze %90 : memref<1x128x256xbf16, #tpu.memory_space<vmem>> -> memref<128x256xbf16, #tpu.memory_space<vmem>>
    %92 = tpu.memref_slice %arg10[%c0_i32_76] : memref<3x!tpu.dma_semaphore, #tpu.memory_space<semaphore_mem>> -> memref<1x!tpu.dma_semaphore, #tpu.memory_space<semaphore_mem>>
    %93 = tpu.memref_squeeze %92 : memref<1x!tpu.dma_semaphore, #tpu.memory_space<semaphore_mem>> -> memref<!tpu.dma_semaphore, #tpu.memory_space<semaphore_mem>>
    tpu.wait_dma2 semaphore(%93 : memref<!tpu.dma_semaphore, #tpu.memory_space<semaphore_mem>>) src(%89 : memref<128x256xbf16, #tpu.memory_space<any>>) dst(%91 : memref<128x256xbf16, #tpu.memory_space<vmem>>)
    %94 = arith.truncf %87 : vector<8x128xf32> to vector<8x128xbf16>
    %c0_81 = arith.constant 0 : index
    %c0_82 = arith.constant 0 : index
    %c0_83 = arith.constant 0 : index
    %95 = vector.load %arg7[%c0_81, %c0_82, %c0_83] : memref<3x128x256xbf16, #tpu.memory_space<vmem>>, vector<1x128x256xbf16>
    %96 = vector.shape_cast %95 : vector<1x128x256xbf16> to vector<128x256xbf16>
    %cst_84 = arith.constant dense<0.000000e+00> : vector<8x256xf32>
    %97 = tpu.matmul %94, %96, %cst_84 {dimension_numbers = #tpu.dot_dimension_numbers<[1], [0], [0], [1], [0, 0, 1, 1], [], []>} : vector<8x128xbf16>, vector<128x256xbf16>, vector<8x256xf32> -> vector<8x256xf32>
    %c1 = arith.constant 1 : index
    %c0_85 = arith.constant 0 : index
    %c0_86 = arith.constant 0 : index
    %98 = vector.load %arg1[%c1, %c0_85, %c0_86] : memref<8x8x256xf32, #tpu.memory_space<vmem>>, vector<1x8x256xf32>
    %99 = vector.shape_cast %98 : vector<1x8x256xf32> to vector<8x256xf32>
    %100 = vector.extract_strided_slice %99 {offsets = [0, 0], sizes = [1, 256], strides = [1, 1]} : vector<8x256xf32> to vector<1x256xf32>
    %101 = vector.extract_strided_slice %99 {offsets = [1, 0], sizes = [1, 256], strides = [1, 1]} : vector<8x256xf32> to vector<1x256xf32>
    %cst_87 = arith.constant dense<0.000000e+00> : vector<256xf32>
    %102 = vector.multi_reduction <add>, %97, %cst_87 [0] : vector<8x256xf32> to vector<256xf32>
    %103 = vector.shape_cast %102 : vector<256xf32> to vector<1x256xf32>
    %104 = arith.mulf %97, %97 : vector<8x256xf32>
    %cst_88 = arith.constant dense<0.000000e+00> : vector<256xf32>
    %105 = vector.multi_reduction <add>, %104, %cst_88 [0] : vector<8x256xf32> to vector<256xf32>
    %106 = vector.shape_cast %105 : vector<256xf32> to vector<1x256xf32>
    %cst_89 = arith.constant 1.250000e-01 : f32
    %107 = vector.broadcast %cst_89 : f32 to vector<1x256xf32>
    %108 = arith.mulf %103, %107 : vector<1x256xf32>
    %cst_90 = arith.constant 1.250000e-01 : f32
    %109 = vector.broadcast %cst_90 : f32 to vector<1x256xf32>
    %110 = arith.mulf %106, %109 : vector<1x256xf32>
    %111 = arith.mulf %108, %108 : vector<1x256xf32>
    %112 = arith.subf %110, %111 : vector<1x256xf32>
    %cst_91 = arith.constant 0.000000e+00 : f32
    %113 = vector.broadcast %cst_91 : f32 to vector<1x256xf32>
    %114 = arith.maximumf %112, %113 : vector<1x256xf32>
    %cst_92 = arith.constant 9.99999974E-6 : f32
    %115 = vector.broadcast %cst_92 : f32 to vector<1x256xf32>
    %116 = arith.addf %114, %115 : vector<1x256xf32>
    %117 = math.rsqrt %116 : vector<1x256xf32>
    %118 = arith.mulf %117, %100 : vector<1x256xf32>
    %119 = arith.mulf %108, %118 : vector<1x256xf32>
    %120 = arith.subf %101, %119 : vector<1x256xf32>
    %121 = vector.broadcast %118 : vector<1x256xf32> to vector<8x256xf32>
    %122 = arith.mulf %97, %121 : vector<8x256xf32>
    %123 = vector.broadcast %120 : vector<1x256xf32> to vector<8x256xf32>
    %124 = arith.addf %122, %123 : vector<8x256xf32>
    %cst_93 = arith.constant 0.000000e+00 : f32
    %125 = vector.broadcast %cst_93 : f32 to vector<8x256xf32>
    %126 = arith.maximumf %124, %125 : vector<8x256xf32>
    %c0_i32_94 = arith.constant 0 : i32
    %c0_i32_95 = arith.constant 0 : i32
    %c0_i32_96 = arith.constant 0 : i32
    %c0_i32_97 = arith.constant 0 : i32
    %c0_i32_98 = arith.constant 0 : i32
    %127 = tpu.memref_slice %arg4[%c0_i32_94, %c0_i32_97, %c0_i32_98] : memref<3x256x128xbf16, #tpu.memory_space<any>> -> memref<1x256x128xbf16, #tpu.memory_space<any>>
    %128 = tpu.memref_squeeze %127 : memref<1x256x128xbf16, #tpu.memory_space<any>> -> memref<256x128xbf16, #tpu.memory_space<any>>
    %c0_i32_99 = arith.constant 0 : i32
    %c0_i32_100 = arith.constant 0 : i32
    %129 = tpu.memref_slice %arg8[%c0_i32_95, %c0_i32_99, %c0_i32_100] : memref<3x256x128xbf16, #tpu.memory_space<vmem>> -> memref<1x256x128xbf16, #tpu.memory_space<vmem>>
    %130 = tpu.memref_squeeze %129 : memref<1x256x128xbf16, #tpu.memory_space<vmem>> -> memref<256x128xbf16, #tpu.memory_space<vmem>>
    %131 = tpu.memref_slice %arg11[%c0_i32_96] : memref<3x!tpu.dma_semaphore, #tpu.memory_space<semaphore_mem>> -> memref<1x!tpu.dma_semaphore, #tpu.memory_space<semaphore_mem>>
    %132 = tpu.memref_squeeze %131 : memref<1x!tpu.dma_semaphore, #tpu.memory_space<semaphore_mem>> -> memref<!tpu.dma_semaphore, #tpu.memory_space<semaphore_mem>>
    tpu.wait_dma2 semaphore(%132 : memref<!tpu.dma_semaphore, #tpu.memory_space<semaphore_mem>>) src(%128 : memref<256x128xbf16, #tpu.memory_space<any>>) dst(%130 : memref<256x128xbf16, #tpu.memory_space<vmem>>)
    %133 = arith.truncf %126 : vector<8x256xf32> to vector<8x256xbf16>
    %c0_101 = arith.constant 0 : index
    %c0_102 = arith.constant 0 : index
    %c0_103 = arith.constant 0 : index
    %134 = vector.load %arg8[%c0_101, %c0_102, %c0_103] : memref<3x256x128xbf16, #tpu.memory_space<vmem>>, vector<1x256x128xbf16>
    %135 = vector.shape_cast %134 : vector<1x256x128xbf16> to vector<256x128xbf16>
    %cst_104 = arith.constant dense<0.000000e+00> : vector<8x128xf32>
    %136 = tpu.matmul %133, %135, %cst_104 {dimension_numbers = #tpu.dot_dimension_numbers<[1], [0], [0], [1], [0, 0, 1, 1], [], []>} : vector<8x256xbf16>, vector<256x128xbf16>, vector<8x128xf32> -> vector<8x128xf32>
    %c2 = arith.constant 2 : index
    %c0_105 = arith.constant 0 : index
    %c0_106 = arith.constant 0 : index
    %137 = vector.load %arg1[%c2, %c0_105, %c0_106] : memref<8x8x256xf32, #tpu.memory_space<vmem>>, vector<1x8x256xf32>
    %138 = vector.shape_cast %137 : vector<1x8x256xf32> to vector<8x256xf32>
    %139 = vector.extract_strided_slice %138 {offsets = [0, 0], sizes = [1, 128], strides = [1, 1]} : vector<8x256xf32> to vector<1x128xf32>
    %140 = vector.extract_strided_slice %138 {offsets = [1, 0], sizes = [1, 128], strides = [1, 1]} : vector<8x256xf32> to vector<1x128xf32>
    %cst_107 = arith.constant dense<0.000000e+00> : vector<128xf32>
    %141 = vector.multi_reduction <add>, %136, %cst_107 [0] : vector<8x128xf32> to vector<128xf32>
    %142 = vector.shape_cast %141 : vector<128xf32> to vector<1x128xf32>
    %143 = arith.mulf %136, %136 : vector<8x128xf32>
    %cst_108 = arith.constant dense<0.000000e+00> : vector<128xf32>
    %144 = vector.multi_reduction <add>, %143, %cst_108 [0] : vector<8x128xf32> to vector<128xf32>
    %145 = vector.shape_cast %144 : vector<128xf32> to vector<1x128xf32>
    %cst_109 = arith.constant 1.250000e-01 : f32
    %146 = vector.broadcast %cst_109 : f32 to vector<1x128xf32>
    %147 = arith.mulf %142, %146 : vector<1x128xf32>
    %cst_110 = arith.constant 1.250000e-01 : f32
    %148 = vector.broadcast %cst_110 : f32 to vector<1x128xf32>
    %149 = arith.mulf %145, %148 : vector<1x128xf32>
    %150 = arith.mulf %147, %147 : vector<1x128xf32>
    %151 = arith.subf %149, %150 : vector<1x128xf32>
    %cst_111 = arith.constant 0.000000e+00 : f32
    %152 = vector.broadcast %cst_111 : f32 to vector<1x128xf32>
    %153 = arith.maximumf %151, %152 : vector<1x128xf32>
    %cst_112 = arith.constant 9.99999974E-6 : f32
    %154 = vector.broadcast %cst_112 : f32 to vector<1x128xf32>
    %155 = arith.addf %153, %154 : vector<1x128xf32>
    %156 = math.rsqrt %155 : vector<1x128xf32>
    %157 = arith.mulf %156, %139 : vector<1x128xf32>
    %158 = arith.mulf %147, %157 : vector<1x128xf32>
    %159 = arith.subf %140, %158 : vector<1x128xf32>
    %160 = vector.broadcast %157 : vector<1x128xf32> to vector<8x128xf32>
    %161 = arith.mulf %136, %160 : vector<8x128xf32>
    %162 = vector.broadcast %159 : vector<1x128xf32> to vector<8x128xf32>
    %163 = arith.addf %161, %162 : vector<8x128xf32>
    %cst_113 = arith.constant 0.000000e+00 : f32
    %164 = vector.broadcast %cst_113 : f32 to vector<8x128xf32>
    %165 = arith.maximumf %163, %164 : vector<8x128xf32>
    %166 = arith.addf %165, %87 : vector<8x128xf32>
    %c1_i32_114 = arith.constant 1 : i32
    %c1_i32_115 = arith.constant 1 : i32
    %c1_i32_116 = arith.constant 1 : i32
    %c0_i32_117 = arith.constant 0 : i32
    %c0_i32_118 = arith.constant 0 : i32
    %167 = tpu.memref_slice %arg3[%c1_i32_114, %c0_i32_117, %c0_i32_118] : memref<3x128x256xbf16, #tpu.memory_space<any>> -> memref<1x128x256xbf16, #tpu.memory_space<any>>
    %168 = tpu.memref_squeeze %167 : memref<1x128x256xbf16, #tpu.memory_space<any>> -> memref<128x256xbf16, #tpu.memory_space<any>>
    %c0_i32_119 = arith.constant 0 : i32
    %c0_i32_120 = arith.constant 0 : i32
    %169 = tpu.memref_slice %arg7[%c1_i32_115, %c0_i32_119, %c0_i32_120] : memref<3x128x256xbf16, #tpu.memory_space<vmem>> -> memref<1x128x256xbf16, #tpu.memory_space<vmem>>
    %170 = tpu.memref_squeeze %169 : memref<1x128x256xbf16, #tpu.memory_space<vmem>> -> memref<128x256xbf16, #tpu.memory_space<vmem>>
    %171 = tpu.memref_slice %arg10[%c1_i32_116] : memref<3x!tpu.dma_semaphore, #tpu.memory_space<semaphore_mem>> -> memref<1x!tpu.dma_semaphore, #tpu.memory_space<semaphore_mem>>
    %172 = tpu.memref_squeeze %171 : memref<1x!tpu.dma_semaphore, #tpu.memory_space<semaphore_mem>> -> memref<!tpu.dma_semaphore, #tpu.memory_space<semaphore_mem>>
    tpu.wait_dma2 semaphore(%172 : memref<!tpu.dma_semaphore, #tpu.memory_space<semaphore_mem>>) src(%168 : memref<128x256xbf16, #tpu.memory_space<any>>) dst(%170 : memref<128x256xbf16, #tpu.memory_space<vmem>>)
    %173 = arith.truncf %166 : vector<8x128xf32> to vector<8x128xbf16>
    %c1_121 = arith.constant 1 : index
    %c0_122 = arith.constant 0 : index
    %c0_123 = arith.constant 0 : index
    %174 = vector.load %arg7[%c1_121, %c0_122, %c0_123] : memref<3x128x256xbf16, #tpu.memory_space<vmem>>, vector<1x128x256xbf16>
    %175 = vector.shape_cast %174 : vector<1x128x256xbf16> to vector<128x256xbf16>
    %cst_124 = arith.constant dense<0.000000e+00> : vector<8x256xf32>
    %176 = tpu.matmul %173, %175, %cst_124 {dimension_numbers = #tpu.dot_dimension_numbers<[1], [0], [0], [1], [0, 0, 1, 1], [], []>} : vector<8x128xbf16>, vector<128x256xbf16>, vector<8x256xf32> -> vector<8x256xf32>
    %c3 = arith.constant 3 : index
    %c0_125 = arith.constant 0 : index
    %c0_126 = arith.constant 0 : index
    %177 = vector.load %arg1[%c3, %c0_125, %c0_126] : memref<8x8x256xf32, #tpu.memory_space<vmem>>, vector<1x8x256xf32>
    %178 = vector.shape_cast %177 : vector<1x8x256xf32> to vector<8x256xf32>
    %179 = vector.extract_strided_slice %178 {offsets = [0, 0], sizes = [1, 256], strides = [1, 1]} : vector<8x256xf32> to vector<1x256xf32>
    %180 = vector.extract_strided_slice %178 {offsets = [1, 0], sizes = [1, 256], strides = [1, 1]} : vector<8x256xf32> to vector<1x256xf32>
    %cst_127 = arith.constant dense<0.000000e+00> : vector<256xf32>
    %181 = vector.multi_reduction <add>, %176, %cst_127 [0] : vector<8x256xf32> to vector<256xf32>
    %182 = vector.shape_cast %181 : vector<256xf32> to vector<1x256xf32>
    %183 = arith.mulf %176, %176 : vector<8x256xf32>
    %cst_128 = arith.constant dense<0.000000e+00> : vector<256xf32>
    %184 = vector.multi_reduction <add>, %183, %cst_128 [0] : vector<8x256xf32> to vector<256xf32>
    %185 = vector.shape_cast %184 : vector<256xf32> to vector<1x256xf32>
    %cst_129 = arith.constant 1.250000e-01 : f32
    %186 = vector.broadcast %cst_129 : f32 to vector<1x256xf32>
    %187 = arith.mulf %182, %186 : vector<1x256xf32>
    %cst_130 = arith.constant 1.250000e-01 : f32
    %188 = vector.broadcast %cst_130 : f32 to vector<1x256xf32>
    %189 = arith.mulf %185, %188 : vector<1x256xf32>
    %190 = arith.mulf %187, %187 : vector<1x256xf32>
    %191 = arith.subf %189, %190 : vector<1x256xf32>
    %cst_131 = arith.constant 0.000000e+00 : f32
    %192 = vector.broadcast %cst_131 : f32 to vector<1x256xf32>
    %193 = arith.maximumf %191, %192 : vector<1x256xf32>
    %cst_132 = arith.constant 9.99999974E-6 : f32
    %194 = vector.broadcast %cst_132 : f32 to vector<1x256xf32>
    %195 = arith.addf %193, %194 : vector<1x256xf32>
    %196 = math.rsqrt %195 : vector<1x256xf32>
    %197 = arith.mulf %196, %179 : vector<1x256xf32>
    %198 = arith.mulf %187, %197 : vector<1x256xf32>
    %199 = arith.subf %180, %198 : vector<1x256xf32>
    %200 = vector.broadcast %197 : vector<1x256xf32> to vector<8x256xf32>
    %201 = arith.mulf %176, %200 : vector<8x256xf32>
    %202 = vector.broadcast %199 : vector<1x256xf32> to vector<8x256xf32>
    %203 = arith.addf %201, %202 : vector<8x256xf32>
    %cst_133 = arith.constant 0.000000e+00 : f32
    %204 = vector.broadcast %cst_133 : f32 to vector<8x256xf32>
    %205 = arith.maximumf %203, %204 : vector<8x256xf32>
    %c1_i32_134 = arith.constant 1 : i32
    %c1_i32_135 = arith.constant 1 : i32
    %c1_i32_136 = arith.constant 1 : i32
    %c0_i32_137 = arith.constant 0 : i32
    %c0_i32_138 = arith.constant 0 : i32
    %206 = tpu.memref_slice %arg4[%c1_i32_134, %c0_i32_137, %c0_i32_138] : memref<3x256x128xbf16, #tpu.memory_space<any>> -> memref<1x256x128xbf16, #tpu.memory_space<any>>
    %207 = tpu.memref_squeeze %206 : memref<1x256x128xbf16, #tpu.memory_space<any>> -> memref<256x128xbf16, #tpu.memory_space<any>>
    %c0_i32_139 = arith.constant 0 : i32
    %c0_i32_140 = arith.constant 0 : i32
    %208 = tpu.memref_slice %arg8[%c1_i32_135, %c0_i32_139, %c0_i32_140] : memref<3x256x128xbf16, #tpu.memory_space<vmem>> -> memref<1x256x128xbf16, #tpu.memory_space<vmem>>
    %209 = tpu.memref_squeeze %208 : memref<1x256x128xbf16, #tpu.memory_space<vmem>> -> memref<256x128xbf16, #tpu.memory_space<vmem>>
    %210 = tpu.memref_slice %arg11[%c1_i32_136] : memref<3x!tpu.dma_semaphore, #tpu.memory_space<semaphore_mem>> -> memref<1x!tpu.dma_semaphore, #tpu.memory_space<semaphore_mem>>
    %211 = tpu.memref_squeeze %210 : memref<1x!tpu.dma_semaphore, #tpu.memory_space<semaphore_mem>> -> memref<!tpu.dma_semaphore, #tpu.memory_space<semaphore_mem>>
    tpu.wait_dma2 semaphore(%211 : memref<!tpu.dma_semaphore, #tpu.memory_space<semaphore_mem>>) src(%207 : memref<256x128xbf16, #tpu.memory_space<any>>) dst(%209 : memref<256x128xbf16, #tpu.memory_space<vmem>>)
    %212 = arith.truncf %205 : vector<8x256xf32> to vector<8x256xbf16>
    %c1_141 = arith.constant 1 : index
    %c0_142 = arith.constant 0 : index
    %c0_143 = arith.constant 0 : index
    %213 = vector.load %arg8[%c1_141, %c0_142, %c0_143] : memref<3x256x128xbf16, #tpu.memory_space<vmem>>, vector<1x256x128xbf16>
    %214 = vector.shape_cast %213 : vector<1x256x128xbf16> to vector<256x128xbf16>
    %cst_144 = arith.constant dense<0.000000e+00> : vector<8x128xf32>
    %215 = tpu.matmul %212, %214, %cst_144 {dimension_numbers = #tpu.dot_dimension_numbers<[1], [0], [0], [1], [0, 0, 1, 1], [], []>} : vector<8x256xbf16>, vector<256x128xbf16>, vector<8x128xf32> -> vector<8x128xf32>
    %c4 = arith.constant 4 : index
    %c0_145 = arith.constant 0 : index
    %c0_146 = arith.constant 0 : index
    %216 = vector.load %arg1[%c4, %c0_145, %c0_146] : memref<8x8x256xf32, #tpu.memory_space<vmem>>, vector<1x8x256xf32>
    %217 = vector.shape_cast %216 : vector<1x8x256xf32> to vector<8x256xf32>
    %218 = vector.extract_strided_slice %217 {offsets = [0, 0], sizes = [1, 128], strides = [1, 1]} : vector<8x256xf32> to vector<1x128xf32>
    %219 = vector.extract_strided_slice %217 {offsets = [1, 0], sizes = [1, 128], strides = [1, 1]} : vector<8x256xf32> to vector<1x128xf32>
    %cst_147 = arith.constant dense<0.000000e+00> : vector<128xf32>
    %220 = vector.multi_reduction <add>, %215, %cst_147 [0] : vector<8x128xf32> to vector<128xf32>
    %221 = vector.shape_cast %220 : vector<128xf32> to vector<1x128xf32>
    %222 = arith.mulf %215, %215 : vector<8x128xf32>
    %cst_148 = arith.constant dense<0.000000e+00> : vector<128xf32>
    %223 = vector.multi_reduction <add>, %222, %cst_148 [0] : vector<8x128xf32> to vector<128xf32>
    %224 = vector.shape_cast %223 : vector<128xf32> to vector<1x128xf32>
    %cst_149 = arith.constant 1.250000e-01 : f32
    %225 = vector.broadcast %cst_149 : f32 to vector<1x128xf32>
    %226 = arith.mulf %221, %225 : vector<1x128xf32>
    %cst_150 = arith.constant 1.250000e-01 : f32
    %227 = vector.broadcast %cst_150 : f32 to vector<1x128xf32>
    %228 = arith.mulf %224, %227 : vector<1x128xf32>
    %229 = arith.mulf %226, %226 : vector<1x128xf32>
    %230 = arith.subf %228, %229 : vector<1x128xf32>
    %cst_151 = arith.constant 0.000000e+00 : f32
    %231 = vector.broadcast %cst_151 : f32 to vector<1x128xf32>
    %232 = arith.maximumf %230, %231 : vector<1x128xf32>
    %cst_152 = arith.constant 9.99999974E-6 : f32
    %233 = vector.broadcast %cst_152 : f32 to vector<1x128xf32>
    %234 = arith.addf %232, %233 : vector<1x128xf32>
    %235 = math.rsqrt %234 : vector<1x128xf32>
    %236 = arith.mulf %235, %218 : vector<1x128xf32>
    %237 = arith.mulf %226, %236 : vector<1x128xf32>
    %238 = arith.subf %219, %237 : vector<1x128xf32>
    %239 = vector.broadcast %236 : vector<1x128xf32> to vector<8x128xf32>
    %240 = arith.mulf %215, %239 : vector<8x128xf32>
    %241 = vector.broadcast %238 : vector<1x128xf32> to vector<8x128xf32>
    %242 = arith.addf %240, %241 : vector<8x128xf32>
    %cst_153 = arith.constant 0.000000e+00 : f32
    %243 = vector.broadcast %cst_153 : f32 to vector<8x128xf32>
    %244 = arith.maximumf %242, %243 : vector<8x128xf32>
    %245 = arith.addf %244, %166 : vector<8x128xf32>
    %c2_i32_154 = arith.constant 2 : i32
    %c2_i32_155 = arith.constant 2 : i32
    %c2_i32_156 = arith.constant 2 : i32
    %c0_i32_157 = arith.constant 0 : i32
    %c0_i32_158 = arith.constant 0 : i32
    %246 = tpu.memref_slice %arg3[%c2_i32_154, %c0_i32_157, %c0_i32_158] : memref<3x128x256xbf16, #tpu.memory_space<any>> -> memref<1x128x256xbf16, #tpu.memory_space<any>>
    %247 = tpu.memref_squeeze %246 : memref<1x128x256xbf16, #tpu.memory_space<any>> -> memref<128x256xbf16, #tpu.memory_space<any>>
    %c0_i32_159 = arith.constant 0 : i32
    %c0_i32_160 = arith.constant 0 : i32
    %248 = tpu.memref_slice %arg7[%c2_i32_155, %c0_i32_159, %c0_i32_160] : memref<3x128x256xbf16, #tpu.memory_space<vmem>> -> memref<1x128x256xbf16, #tpu.memory_space<vmem>>
    %249 = tpu.memref_squeeze %248 : memref<1x128x256xbf16, #tpu.memory_space<vmem>> -> memref<128x256xbf16, #tpu.memory_space<vmem>>
    %250 = tpu.memref_slice %arg10[%c2_i32_156] : memref<3x!tpu.dma_semaphore, #tpu.memory_space<semaphore_mem>> -> memref<1x!tpu.dma_semaphore, #tpu.memory_space<semaphore_mem>>
    %251 = tpu.memref_squeeze %250 : memref<1x!tpu.dma_semaphore, #tpu.memory_space<semaphore_mem>> -> memref<!tpu.dma_semaphore, #tpu.memory_space<semaphore_mem>>
    tpu.wait_dma2 semaphore(%251 : memref<!tpu.dma_semaphore, #tpu.memory_space<semaphore_mem>>) src(%247 : memref<128x256xbf16, #tpu.memory_space<any>>) dst(%249 : memref<128x256xbf16, #tpu.memory_space<vmem>>)
    %252 = arith.truncf %245 : vector<8x128xf32> to vector<8x128xbf16>
    %c2_161 = arith.constant 2 : index
    %c0_162 = arith.constant 0 : index
    %c0_163 = arith.constant 0 : index
    %253 = vector.load %arg7[%c2_161, %c0_162, %c0_163] : memref<3x128x256xbf16, #tpu.memory_space<vmem>>, vector<1x128x256xbf16>
    %254 = vector.shape_cast %253 : vector<1x128x256xbf16> to vector<128x256xbf16>
    %cst_164 = arith.constant dense<0.000000e+00> : vector<8x256xf32>
    %255 = tpu.matmul %252, %254, %cst_164 {dimension_numbers = #tpu.dot_dimension_numbers<[1], [0], [0], [1], [0, 0, 1, 1], [], []>} : vector<8x128xbf16>, vector<128x256xbf16>, vector<8x256xf32> -> vector<8x256xf32>
    %c5 = arith.constant 5 : index
    %c0_165 = arith.constant 0 : index
    %c0_166 = arith.constant 0 : index
    %256 = vector.load %arg1[%c5, %c0_165, %c0_166] : memref<8x8x256xf32, #tpu.memory_space<vmem>>, vector<1x8x256xf32>
    %257 = vector.shape_cast %256 : vector<1x8x256xf32> to vector<8x256xf32>
    %258 = vector.extract_strided_slice %257 {offsets = [0, 0], sizes = [1, 256], strides = [1, 1]} : vector<8x256xf32> to vector<1x256xf32>
    %259 = vector.extract_strided_slice %257 {offsets = [1, 0], sizes = [1, 256], strides = [1, 1]} : vector<8x256xf32> to vector<1x256xf32>
    %cst_167 = arith.constant dense<0.000000e+00> : vector<256xf32>
    %260 = vector.multi_reduction <add>, %255, %cst_167 [0] : vector<8x256xf32> to vector<256xf32>
    %261 = vector.shape_cast %260 : vector<256xf32> to vector<1x256xf32>
    %262 = arith.mulf %255, %255 : vector<8x256xf32>
    %cst_168 = arith.constant dense<0.000000e+00> : vector<256xf32>
    %263 = vector.multi_reduction <add>, %262, %cst_168 [0] : vector<8x256xf32> to vector<256xf32>
    %264 = vector.shape_cast %263 : vector<256xf32> to vector<1x256xf32>
    %cst_169 = arith.constant 1.250000e-01 : f32
    %265 = vector.broadcast %cst_169 : f32 to vector<1x256xf32>
    %266 = arith.mulf %261, %265 : vector<1x256xf32>
    %cst_170 = arith.constant 1.250000e-01 : f32
    %267 = vector.broadcast %cst_170 : f32 to vector<1x256xf32>
    %268 = arith.mulf %264, %267 : vector<1x256xf32>
    %269 = arith.mulf %266, %266 : vector<1x256xf32>
    %270 = arith.subf %268, %269 : vector<1x256xf32>
    %cst_171 = arith.constant 0.000000e+00 : f32
    %271 = vector.broadcast %cst_171 : f32 to vector<1x256xf32>
    %272 = arith.maximumf %270, %271 : vector<1x256xf32>
    %cst_172 = arith.constant 9.99999974E-6 : f32
    %273 = vector.broadcast %cst_172 : f32 to vector<1x256xf32>
    %274 = arith.addf %272, %273 : vector<1x256xf32>
    %275 = math.rsqrt %274 : vector<1x256xf32>
    %276 = arith.mulf %275, %258 : vector<1x256xf32>
    %277 = arith.mulf %266, %276 : vector<1x256xf32>
    %278 = arith.subf %259, %277 : vector<1x256xf32>
    %279 = vector.broadcast %276 : vector<1x256xf32> to vector<8x256xf32>
    %280 = arith.mulf %255, %279 : vector<8x256xf32>
    %281 = vector.broadcast %278 : vector<1x256xf32> to vector<8x256xf32>
    %282 = arith.addf %280, %281 : vector<8x256xf32>
    %cst_173 = arith.constant 0.000000e+00 : f32
    %283 = vector.broadcast %cst_173 : f32 to vector<8x256xf32>
    %284 = arith.maximumf %282, %283 : vector<8x256xf32>
    %c2_i32_174 = arith.constant 2 : i32
    %c2_i32_175 = arith.constant 2 : i32
    %c2_i32_176 = arith.constant 2 : i32
    %c0_i32_177 = arith.constant 0 : i32
    %c0_i32_178 = arith.constant 0 : i32
    %285 = tpu.memref_slice %arg4[%c2_i32_174, %c0_i32_177, %c0_i32_178] : memref<3x256x128xbf16, #tpu.memory_space<any>> -> memref<1x256x128xbf16, #tpu.memory_space<any>>
    %286 = tpu.memref_squeeze %285 : memref<1x256x128xbf16, #tpu.memory_space<any>> -> memref<256x128xbf16, #tpu.memory_space<any>>
    %c0_i32_179 = arith.constant 0 : i32
    %c0_i32_180 = arith.constant 0 : i32
    %287 = tpu.memref_slice %arg8[%c2_i32_175, %c0_i32_179, %c0_i32_180] : memref<3x256x128xbf16, #tpu.memory_space<vmem>> -> memref<1x256x128xbf16, #tpu.memory_space<vmem>>
    %288 = tpu.memref_squeeze %287 : memref<1x256x128xbf16, #tpu.memory_space<vmem>> -> memref<256x128xbf16, #tpu.memory_space<vmem>>
    %289 = tpu.memref_slice %arg11[%c2_i32_176] : memref<3x!tpu.dma_semaphore, #tpu.memory_space<semaphore_mem>> -> memref<1x!tpu.dma_semaphore, #tpu.memory_space<semaphore_mem>>
    %290 = tpu.memref_squeeze %289 : memref<1x!tpu.dma_semaphore, #tpu.memory_space<semaphore_mem>> -> memref<!tpu.dma_semaphore, #tpu.memory_space<semaphore_mem>>
    tpu.wait_dma2 semaphore(%290 : memref<!tpu.dma_semaphore, #tpu.memory_space<semaphore_mem>>) src(%286 : memref<256x128xbf16, #tpu.memory_space<any>>) dst(%288 : memref<256x128xbf16, #tpu.memory_space<vmem>>)
    %291 = arith.truncf %284 : vector<8x256xf32> to vector<8x256xbf16>
    %c2_181 = arith.constant 2 : index
    %c0_182 = arith.constant 0 : index
    %c0_183 = arith.constant 0 : index
    %292 = vector.load %arg8[%c2_181, %c0_182, %c0_183] : memref<3x256x128xbf16, #tpu.memory_space<vmem>>, vector<1x256x128xbf16>
    %293 = vector.shape_cast %292 : vector<1x256x128xbf16> to vector<256x128xbf16>
    %cst_184 = arith.constant dense<0.000000e+00> : vector<8x128xf32>
    %294 = tpu.matmul %291, %293, %cst_184 {dimension_numbers = #tpu.dot_dimension_numbers<[1], [0], [0], [1], [0, 0, 1, 1], [], []>} : vector<8x256xbf16>, vector<256x128xbf16>, vector<8x128xf32> -> vector<8x128xf32>
    %c6 = arith.constant 6 : index
    %c0_185 = arith.constant 0 : index
    %c0_186 = arith.constant 0 : index
    %295 = vector.load %arg1[%c6, %c0_185, %c0_186] : memref<8x8x256xf32, #tpu.memory_space<vmem>>, vector<1x8x256xf32>
    %296 = vector.shape_cast %295 : vector<1x8x256xf32> to vector<8x256xf32>
    %297 = vector.extract_strided_slice %296 {offsets = [0, 0], sizes = [1, 128], strides = [1, 1]} : vector<8x256xf32> to vector<1x128xf32>
    %298 = vector.extract_strided_slice %296 {offsets = [1, 0], sizes = [1, 128], strides = [1, 1]} : vector<8x256xf32> to vector<1x128xf32>
    %cst_187 = arith.constant dense<0.000000e+00> : vector<128xf32>
    %299 = vector.multi_reduction <add>, %294, %cst_187 [0] : vector<8x128xf32> to vector<128xf32>
    %300 = vector.shape_cast %299 : vector<128xf32> to vector<1x128xf32>
    %301 = arith.mulf %294, %294 : vector<8x128xf32>
    %cst_188 = arith.constant dense<0.000000e+00> : vector<128xf32>
    %302 = vector.multi_reduction <add>, %301, %cst_188 [0] : vector<8x128xf32> to vector<128xf32>
    %303 = vector.shape_cast %302 : vector<128xf32> to vector<1x128xf32>
    %cst_189 = arith.constant 1.250000e-01 : f32
    %304 = vector.broadcast %cst_189 : f32 to vector<1x128xf32>
    %305 = arith.mulf %300, %304 : vector<1x128xf32>
    %cst_190 = arith.constant 1.250000e-01 : f32
    %306 = vector.broadcast %cst_190 : f32 to vector<1x128xf32>
    %307 = arith.mulf %303, %306 : vector<1x128xf32>
    %308 = arith.mulf %305, %305 : vector<1x128xf32>
    %309 = arith.subf %307, %308 : vector<1x128xf32>
    %cst_191 = arith.constant 0.000000e+00 : f32
    %310 = vector.broadcast %cst_191 : f32 to vector<1x128xf32>
    %311 = arith.maximumf %309, %310 : vector<1x128xf32>
    %cst_192 = arith.constant 9.99999974E-6 : f32
    %312 = vector.broadcast %cst_192 : f32 to vector<1x128xf32>
    %313 = arith.addf %311, %312 : vector<1x128xf32>
    %314 = math.rsqrt %313 : vector<1x128xf32>
    %315 = arith.mulf %314, %297 : vector<1x128xf32>
    %316 = arith.mulf %305, %315 : vector<1x128xf32>
    %317 = arith.subf %298, %316 : vector<1x128xf32>
    %318 = vector.broadcast %315 : vector<1x128xf32> to vector<8x128xf32>
    %319 = arith.mulf %294, %318 : vector<8x128xf32>
    %320 = vector.broadcast %317 : vector<1x128xf32> to vector<8x128xf32>
    %321 = arith.addf %319, %320 : vector<8x128xf32>
    %cst_193 = arith.constant 0.000000e+00 : f32
    %322 = vector.broadcast %cst_193 : f32 to vector<8x128xf32>
    %323 = arith.maximumf %321, %322 : vector<8x128xf32>
    %324 = arith.addf %323, %245 : vector<8x128xf32>
    %c1_i32_194 = arith.constant 1 : i32
    %c1_i32_195 = arith.constant 1 : i32
    %c1_i32_196 = arith.constant 1 : i32
    %c0_i32_197 = arith.constant 0 : i32
    %c0_i32_198 = arith.constant 0 : i32
    %325 = tpu.memref_slice %arg2[%c1_i32_194, %c0_i32_197, %c0_i32_198] : memref<2x128x128xbf16, #tpu.memory_space<any>> -> memref<1x128x128xbf16, #tpu.memory_space<any>>
    %326 = tpu.memref_squeeze %325 : memref<1x128x128xbf16, #tpu.memory_space<any>> -> memref<128x128xbf16, #tpu.memory_space<any>>
    %c0_i32_199 = arith.constant 0 : i32
    %c0_i32_200 = arith.constant 0 : i32
    %327 = tpu.memref_slice %arg6[%c1_i32_195, %c0_i32_199, %c0_i32_200] : memref<2x128x128xbf16, #tpu.memory_space<vmem>> -> memref<1x128x128xbf16, #tpu.memory_space<vmem>>
    %328 = tpu.memref_squeeze %327 : memref<1x128x128xbf16, #tpu.memory_space<vmem>> -> memref<128x128xbf16, #tpu.memory_space<vmem>>
    %329 = tpu.memref_slice %arg9[%c1_i32_196] : memref<2x!tpu.dma_semaphore, #tpu.memory_space<semaphore_mem>> -> memref<1x!tpu.dma_semaphore, #tpu.memory_space<semaphore_mem>>
    %330 = tpu.memref_squeeze %329 : memref<1x!tpu.dma_semaphore, #tpu.memory_space<semaphore_mem>> -> memref<!tpu.dma_semaphore, #tpu.memory_space<semaphore_mem>>
    tpu.wait_dma2 semaphore(%330 : memref<!tpu.dma_semaphore, #tpu.memory_space<semaphore_mem>>) src(%326 : memref<128x128xbf16, #tpu.memory_space<any>>) dst(%328 : memref<128x128xbf16, #tpu.memory_space<vmem>>)
    %331 = arith.truncf %324 : vector<8x128xf32> to vector<8x128xbf16>
    %c1_201 = arith.constant 1 : index
    %c0_202 = arith.constant 0 : index
    %c0_203 = arith.constant 0 : index
    %332 = vector.load %arg6[%c1_201, %c0_202, %c0_203] : memref<2x128x128xbf16, #tpu.memory_space<vmem>>, vector<1x128x128xbf16>
    %333 = vector.shape_cast %332 : vector<1x128x128xbf16> to vector<128x128xbf16>
    %cst_204 = arith.constant dense<0.000000e+00> : vector<8x128xf32>
    %334 = tpu.matmul %331, %333, %cst_204 {dimension_numbers = #tpu.dot_dimension_numbers<[1], [0], [0], [1], [0, 0, 1, 1], [], []>} : vector<8x128xbf16>, vector<128x128xbf16>, vector<8x128xf32> -> vector<8x128xf32>
    %c7 = arith.constant 7 : index
    %c0_205 = arith.constant 0 : index
    %c0_206 = arith.constant 0 : index
    %335 = vector.load %arg1[%c7, %c0_205, %c0_206] : memref<8x8x256xf32, #tpu.memory_space<vmem>>, vector<1x8x256xf32>
    %336 = vector.shape_cast %335 : vector<1x8x256xf32> to vector<8x256xf32>
    %337 = vector.extract_strided_slice %336 {offsets = [0, 0], sizes = [1, 128], strides = [1, 1]} : vector<8x256xf32> to vector<1x128xf32>
    %338 = vector.extract_strided_slice %336 {offsets = [1, 0], sizes = [1, 128], strides = [1, 1]} : vector<8x256xf32> to vector<1x128xf32>
    %cst_207 = arith.constant dense<0.000000e+00> : vector<128xf32>
    %339 = vector.multi_reduction <add>, %334, %cst_207 [0] : vector<8x128xf32> to vector<128xf32>
    %340 = vector.shape_cast %339 : vector<128xf32> to vector<1x128xf32>
    %341 = arith.mulf %334, %334 : vector<8x128xf32>
    %cst_208 = arith.constant dense<0.000000e+00> : vector<128xf32>
    %342 = vector.multi_reduction <add>, %341, %cst_208 [0] : vector<8x128xf32> to vector<128xf32>
    %343 = vector.shape_cast %342 : vector<128xf32> to vector<1x128xf32>
    %cst_209 = arith.constant 1.250000e-01 : f32
    %344 = vector.broadcast %cst_209 : f32 to vector<1x128xf32>
    %345 = arith.mulf %340, %344 : vector<1x128xf32>
    %cst_210 = arith.constant 1.250000e-01 : f32
    %346 = vector.broadcast %cst_210 : f32 to vector<1x128xf32>
    %347 = arith.mulf %343, %346 : vector<1x128xf32>
    %348 = arith.mulf %345, %345 : vector<1x128xf32>
    %349 = arith.subf %347, %348 : vector<1x128xf32>
    %cst_211 = arith.constant 0.000000e+00 : f32
    %350 = vector.broadcast %cst_211 : f32 to vector<1x128xf32>
    %351 = arith.maximumf %349, %350 : vector<1x128xf32>
    %cst_212 = arith.constant 9.99999974E-6 : f32
    %352 = vector.broadcast %cst_212 : f32 to vector<1x128xf32>
    %353 = arith.addf %351, %352 : vector<1x128xf32>
    %354 = math.rsqrt %353 : vector<1x128xf32>
    %355 = arith.mulf %354, %337 : vector<1x128xf32>
    %356 = arith.mulf %345, %355 : vector<1x128xf32>
    %357 = arith.subf %338, %356 : vector<1x128xf32>
    %358 = vector.broadcast %355 : vector<1x128xf32> to vector<8x128xf32>
    %359 = arith.mulf %334, %358 : vector<8x128xf32>
    %360 = vector.broadcast %357 : vector<1x128xf32> to vector<8x128xf32>
    %361 = arith.addf %359, %360 : vector<8x128xf32>
    %c7_213 = arith.constant 7 : index
    %c0_214 = arith.constant 0 : index
    %c0_215 = arith.constant 0 : index
    %362 = vector.load %arg1[%c7_213, %c0_214, %c0_215] : memref<8x8x256xf32, #tpu.memory_space<vmem>>, vector<1x8x256xf32>
    %363 = vector.shape_cast %362 : vector<1x8x256xf32> to vector<8x256xf32>
    %364 = vector.extract_strided_slice %363 {offsets = [2, 0], sizes = [1, 128], strides = [1, 1]} : vector<8x256xf32> to vector<1x128xf32>
    %365 = math.tanh %361 : vector<8x128xf32>
    %366 = vector.broadcast %364 : vector<1x128xf32> to vector<8x128xf32>
    %367 = arith.mulf %365, %366 : vector<8x128xf32>
    %c0_216 = arith.constant 0 : index
    %c0_217 = arith.constant 0 : index
    %368 = vector.load %arg5[%c0_216, %c0_217] : memref<8x128xf32, #tpu.memory_space<vmem>>, vector<8x128xf32>
    tpu.vector_store %arg5[%c0_216, %c0_217], %367 {strides = array<i32>} : memref<8x128xf32, #tpu.memory_space<vmem>>, vector<8x128xf32>,
    return
  }
}

</mosaic_0001>

<llo_original>
// kernel: tpu_custom_call.1
$region0: #{tpu_custom_call.1}
  #allocation0 [shape = 'u32[]', space=smem, size = 0x4, offset = 0x4, fixed_abs, tag = 'smem constant byte address 0x4 - core index']
  #allocation1 [shape = 'u32[144,128]{1,0:T(1,128)}', space=vmem, size = 0x12000, scoped, tag = 'internal scratch']
  #allocation2 [shape = 'bf16[2,128,128]{2,1,0:T(16,128)(2,1)}', space=vmem, size = 0x10000, scoped, tag = 'scratch operand']
  #allocation3 [shape = 'bf16[3,128,256]{2,1,0:T(16,128)(2,1)}', space=vmem, size = 0x30000, scoped, tag = 'scratch operand']
  #allocation4 [shape = 'bf16[3,256,128]{2,1,0:T(16,128)(2,1)}', space=vmem, size = 0x30000, scoped, tag = 'scratch operand']
  #allocation5 [shape = 's32[2]{0}', space=sflag, size = 0x8, scoped, tag = 'scratch operand']
  #allocation6 [shape = 's32[3]{0}', space=sflag, size = 0xc, scoped, tag = 'scratch operand']
  #allocation7 [shape = 's32[3]{0}', space=sflag, size = 0xc, scoped, tag = 'scratch operand']
  #allocation14 [shape = 's32[]', space=sflag, size = 0x4, offset = 0, fixed_abs, tag = 'sflag constant byte address 0x0 - dummy sync flag']
  #allocation15 [shape = 's32[]', space=sflag, size = 0x4, offset = 0, fixed_abs, tag = 'sflag constant byte address 0x0 - dummy sync flag']
  #allocation16 [shape = 'u32[]', space=smem, size = 0x4, offset = 0x44, fixed_abs, tag = 'smem constant byte address 0x44 - assertion arg 0']
  #allocation17 [shape = 'u32[]', space=smem, size = 0x4, offset = 0x48, fixed_abs, tag = 'smem constant byte address 0x48 - assertion arg 1']
  #allocation18 [shape = 's32[]', space=sflag, size = 0x4, offset = 0, fixed_abs, tag = 'sflag constant byte address 0x0 - dummy sync flag']
  #allocation20 [shape = 's32[]', space=sflag, size = 0x4, offset = 0, fixed_abs, tag = 'sflag constant byte address 0x0 - dummy sync flag']
  #allocation21 [shape = 's32[]', space=sflag, size = 0x4, offset = 0, fixed_abs, tag = 'sflag constant byte address 0x0 - dummy sync flag']
  #allocation22 [shape = 's32[]', space=sflag, size = 0x4, offset = 0, fixed_abs, tag = 'sflag constant byte address 0x0 - dummy sync flag']
  #allocation24 [shape = 's32[]', space=sflag, size = 0x4, offset = 0, fixed_abs, tag = 'sflag constant byte address 0x0 - dummy sync flag']
  #allocation25 [shape = 's32[]', space=sflag, size = 0x4, offset = 0, fixed_abs, tag = 'sflag constant byte address 0x0 - dummy sync flag']
  #allocation26 [shape = 's32[]', space=sflag, size = 0x4, offset = 0, fixed_abs, tag = 'sflag constant byte address 0x0 - dummy sync flag']
  #allocation28 [shape = 's32[]', space=sflag, size = 0x4, offset = 0, fixed_abs, tag = 'sflag constant byte address 0x0 - dummy sync flag']
  #allocation29 [shape = 's32[]', space=sflag, size = 0x4, offset = 0, fixed_abs, tag = 'sflag constant byte address 0x0 - dummy sync flag']
  #allocation30 [shape = 's32[]', space=sflag, size = 0x4, offset = 0, fixed_abs, tag = 'sflag constant byte address 0x0 - dummy sync flag']
  #allocation31 [shape = 's32[]', space=sflag, size = 0x4, offset = 0, fixed_abs, tag = 'sflag constant byte address 0x0 - dummy sync flag']
  %s0 = inlined_call_operand.hbm [shape: f32[8,128], index: 0, kind: input, shape index: {}]
  %s1 = inlined_call_operand.hbm [shape: f32[8,8,256], index: 1, kind: input, shape index: {}]
  %s2 = inlined_call_operand.hbm [shape: bf16[2,128,128], index: 2, kind: input, shape index: {}]
  %s3 = inlined_call_operand.hbm [shape: bf16[3,128,256], index: 3, kind: input, shape index: {}]
  %s4 = inlined_call_operand.hbm [shape: bf16[3,256,128], index: 4, kind: input, shape index: {}]
  %s5 = inlined_call_operand.hbm [shape: f32[8,128], index: 5, kind: output, shape index: {}]
  %s6 = sld [smem:[#allocation0]]
  $region46: #{tpu_custom_call.1} parent=0
    _
  %s8 = ssub.s32 1, %s6
  %s9 = scalar_select 0, %s8, %s6
  $region1: #{tpu_custom_call.1} parent=0
    #allocation8 [shape = 'u8[4096]{0}', space=vmem, size = 0x1000, scoped, tag = 'input window, operand 0, single buffered']
    #allocation9 [shape = 's32[1]{0}', space=sflag, size = 0x4, scoped, tag = 'scoped memory for tpu_custom_call.1']
    #allocation10 [shape = 's32[1]{0}', space=sflag, size = 0x4, scoped, tag = 'scoped memory for tpu_custom_call.1']
    #allocation11 [shape = 'u8[65536]{0}', space=vmem, size = 0x10000, scoped, tag = 'input window, operand 1, single buffered']
    #allocation12 [shape = 's32[1]{0}', space=sflag, size = 0x4, scoped, tag = 'scoped memory for tpu_custom_call.1']
    #allocation13 [shape = 'u8[4096]{0}', space=vmem, size = 0x1000, scoped, tag = 'output window, operand 0, single buffered']
    #allocation19 [shape = 'u32[9]{0}', space=smem, size = 0x24, scoped, tag = 'DMA stride descriptor']
    #allocation23 [shape = 'u32[9]{0}', space=smem, size = 0x24, scoped, tag = 'DMA stride descriptor']
    #allocation27 [shape = 'u32[9]{0}', space=smem, size = 0x24, scoped, tag = 'DMA stride descriptor']
    %10 = vsyncpa [#allocation9], 0
    %11 = vsyncpa [#allocation12], 0
    %12 = vsyncpa [#allocation10], 0
    // Predicated region
    $region2: #{tpu_custom_call.1} parent=1 // pred_check
      _
    $region3: #{tpu_custom_call.1} parent=1 // pred_check_branch
      %14 = sbr.rel (0) target = $region5
    $region4: #{tpu_custom_call.1} parent=1 // pred_region
      %s16 = ssub.s32 128, 128
      %17 = vsyncadd [#allocation9], %s16
      %s19 = sshll.u32 [#allocation8], 4
      %s20 = int_to_ptr.vmem [resolvable:$true] %s19
      %22 = dma.hbm_to_vmem [thread:$0]  %s0, 128, %s20, [#allocation9]
    $region5: #{tpu_custom_call.1} parent=1 // pred_fallthru
      _
    // Predicated region
    $region6: #{tpu_custom_call.1} parent=1 // pred_check
      _
    $region7: #{tpu_custom_call.1} parent=1 // pred_check_branch
      %24 = sbr.rel (0) target = $region9
    $region8: #{tpu_custom_call.1} parent=1 // pred_region
      %s26 = ssub.s32 2048, 2048
      %27 = vsyncadd [#allocation12], %s26
      %s28 = sshll.u32 [#allocation11], 4
      %s29 = int_to_ptr.vmem [resolvable:$true] %s28
      %34 = dma.hbm_to_vmem [thread:$0]  %s1, 2048, %s29, [#allocation12], 256, 256, 16
    $region9: #{tpu_custom_call.1} parent=1 // pred_fallthru
      _
    // Predicated region
    $region10: #{tpu_custom_call.1} parent=1 // pred_check
      _
    $region11: #{tpu_custom_call.1} parent=1 // pred_check_branch
      %36 = sbr.rel (0) target = $region13
    $region12: #{tpu_custom_call.1} parent=1 // pred_region
      %37 = dma.done [#allocation9], 128
    $region13: #{tpu_custom_call.1} parent=1 // pred_fallthru
      _
    // Predicated region
    $region14: #{tpu_custom_call.1} parent=1 // pred_check
      _
    $region15: #{tpu_custom_call.1} parent=1 // pred_check_branch
      %39 = sbr.rel (0) target = $region17
    $region16: #{tpu_custom_call.1} parent=1 // pred_region
      %40 = dma.done [#allocation12], 2048
    $region17: #{tpu_custom_call.1} parent=1 // pred_fallthru
      _
    // Predicated region
    $region18: #{tpu_custom_call.1} parent=1 // pred_check
      _
    $region19: #{tpu_custom_call.1} parent=1 // pred_check_branch
      %43 = sbr.rel target = $region21
    $region20: #{tpu_custom_call.1} parent=1 // pred_region
      %44 = sst [smem:[#allocation16]] [#allocation15]
      %45 = sst [smem:[#allocation17]] [#allocation14]
    $region21: #{tpu_custom_call.1} parent=1 // pred_fallthru
      _
    %47 = shalt.err (0)
    %s49 = sshll.u32 [#allocation2], 4
    %s50 = int_to_ptr.vmem [resolvable:$true] %s49
    %52 = dma.hbm_to_vmem [thread:$0]  %s2, 1024, %s50, [#allocation5]
    %s54 = sshll.u32 1, 14
    %s55 = sxor.u32 4294967295, %s54
    %s57 = sld [smem:[#allocation0]]
    %s58 = sadd.s32 2, %s57
    %s60 = sshll.u32 7, 26
    %s61 = sxor.u32 4294967295, %s60
    %s62 = sand.u32 0, %s61
    %s63 = sshll.u32 %s58, 26
    %s64 = sor.u32 %s62, %s63
    %s65 = sshll.u32 [#allocation3], 4
    %s66 = int_to_ptr.vmem [resolvable:$true] %s65
    %69 = sst [smem:[#allocation19]] 256
    %s70 = scalar_lea.smem [#allocation19], 1
    %71 = sst [smem:[%s70]] 256
    %s72 = scalar_lea.smem [#allocation19], 2
    %73 = sst [smem:[%s72]] 2
    %s74 = scalar_lea.smem [#allocation19], 3
    %75 = sst [smem:[%s74]] 64
    %s76 = scalar_lea.smem [#allocation19], 4
    %77 = sst [smem:[%s76]] 128
    %s78 = scalar_lea.smem [#allocation19], 5
    %79 = sst [smem:[%s78]] 2
    %s80 = scalar_lea.smem [#allocation19], 6
    %81 = sst [smem:[%s80]] 128
    %s82 = scalar_lea.smem [#allocation19], 7
    %83 = sst [smem:[%s82]] 64
    %s84 = scalar_lea.smem [#allocation19], 8
    %85 = sst [smem:[%s84]] 4
    %87 = dma.general %s3, 2048, %s66, [#allocation6], [#allocation18], [#allocation19], %s64, 0
    // Predicated region
    $region22: #{tpu_custom_call.1} parent=1 // pred_check
      _
    $region23: #{tpu_custom_call.1} parent=1 // pred_check_branch
      %89 = sbr.rel target = $region25
    $region24: #{tpu_custom_call.1} parent=1 // pred_region
      %90 = sst [smem:[#allocation16]] [#allocation21]
      %91 = sst [smem:[#allocation17]] [#allocation20]
    $region25: #{tpu_custom_call.1} parent=1 // pred_fallthru
      _
    %93 = shalt.err (0)
    %s95 = sshll.u32 [#allocation4], 4
    %s96 = int_to_ptr.vmem [resolvable:$true] %s95
    %98 = dma.hbm_to_vmem [thread:$0]  %s4, 2048, %s96, [#allocation7]
    %s99 = scalar_lea.hbm %s3, 2048
    %s100 = scalar_lea.vmem [#allocation3], 128
    %s101 = scalar_lea.sflag [#allocation6], 1
    %s103 = sshll.u32 1, 14
    %s104 = sxor.u32 4294967295, %s103
    %s106 = sadd.s32 2, %s57
    %s108 = sshll.u32 7, 26
    %s109 = sxor.u32 4294967295, %s108
    %s110 = sand.u32 0, %s109
    %s111 = sshll.u32 %s106, 26
    %s112 = sor.u32 %s110, %s111
    %s113 = sshll.u32 %s100, 4
    %s114 = int_to_ptr.vmem [resolvable:$true] %s113
    %117 = sst [smem:[#allocation23]] 256
    %s118 = scalar_lea.smem [#allocation23], 1
    %119 = sst [smem:[%s118]] 256
    %s120 = scalar_lea.smem [#allocation23], 2
    %121 = sst [smem:[%s120]] 2
    %s122 = scalar_lea.smem [#allocation23], 3
    %123 = sst [smem:[%s122]] 64
    %s124 = scalar_lea.smem [#allocation23], 4
    %125 = sst [smem:[%s124]] 128
    %s126 = scalar_lea.smem [#allocation23], 5
    %127 = sst [smem:[%s126]] 2
    %s128 = scalar_lea.smem [#allocation23], 6
    %129 = sst [smem:[%s128]] 128
    %s130 = scalar_lea.smem [#allocation23], 7
    %131 = sst [smem:[%s130]] 64
    %s132 = scalar_lea.smem [#allocation23], 8
    %133 = sst [smem:[%s132]] 4
    %135 = dma.general %s99, 2048, %s114, %s101, [#allocation22], [#allocation23], %s112, 0
    %s136 = scalar_lea.hbm %s4, 2048
    %s137 = scalar_lea.vmem [#allocation4], 128
    %s138 = scalar_lea.sflag [#allocation7], 1
    // Predicated region
    $region26: #{tpu_custom_call.1} parent=1 // pred_check
      _
    $region27: #{tpu_custom_call.1} parent=1 // pred_check_branch
      %140 = sbr.rel target = $region29
    $region28: #{tpu_custom_call.1} parent=1 // pred_region
      %141 = sst [smem:[#allocation16]] [#allocation25]
      %142 = sst [smem:[#allocation17]] [#allocation24]
    $region29: #{tpu_custom_call.1} parent=1 // pred_fallthru
      _
    %144 = shalt.err (0)
    %s146 = sshll.u32 %s137, 4
    %s147 = int_to_ptr.vmem [resolvable:$true] %s146
    %149 = dma.hbm_to_vmem [thread:$0]  %s136, 2048, %s147, %s138
    %s150 = scalar_lea.hbm %s3, 4096
    %s151 = scalar_lea.vmem [#allocation3], 256
    %s152 = scalar_lea.sflag [#allocation6], 2
    %s154 = sshll.u32 1, 14
    %s155 = sxor.u32 4294967295, %s154
    %s157 = sadd.s32 2, %s57
    %s159 = sshll.u32 7, 26
    %s160 = sxor.u32 4294967295, %s159
    %s161 = sand.u32 0, %s160
    %s162 = sshll.u32 %s157, 26
    %s163 = sor.u32 %s161, %s162
    %s164 = sshll.u32 %s151, 4
    %s165 = int_to_ptr.vmem [resolvable:$true] %s164
    %168 = sst [smem:[#allocation27]] 256
    %s169 = scalar_lea.smem [#allocation27], 1
    %170 = sst [smem:[%s169]] 256
    %s171 = scalar_lea.smem [#allocation27], 2
    %172 = sst [smem:[%s171]] 2
    %s173 = scalar_lea.smem [#allocation27], 3
    %174 = sst [smem:[%s173]] 64
    %s175 = scalar_lea.smem [#allocation27], 4
    %176 = sst [smem:[%s175]] 128
    %s177 = scalar_lea.smem [#allocation27], 5
    %178 = sst [smem:[%s177]] 2
    %s179 = scalar_lea.smem [#allocation27], 6
    %180 = sst [smem:[%s179]] 128
    %s181 = scalar_lea.smem [#allocation27], 7
    %182 = sst [smem:[%s181]] 64
    %s183 = scalar_lea.smem [#allocation27], 8
    %184 = sst [smem:[%s183]] 4
    %186 = dma.general %s150, 2048, %s165, %s152, [#allocation26], [#allocation27], %s163, 0
    %s187 = scalar_lea.hbm %s4, 4096
    %s188 = scalar_lea.vmem [#allocation4], 256
    %s189 = scalar_lea.sflag [#allocation7], 2
    // Predicated region
    $region30: #{tpu_custom_call.1} parent=1 // pred_check
      _
    $region31: #{tpu_custom_call.1} parent=1 // pred_check_branch
      %191 = sbr.rel target = $region33
    $region32: #{tpu_custom_call.1} parent=1 // pred_region
      %192 = sst [smem:[#allocation16]] [#allocation29]
      %193 = sst [smem:[#allocation17]] [#allocation28]
    $region33: #{tpu_custom_call.1} parent=1 // pred_fallthru
      _
    %195 = shalt.err (0)
    %s197 = sshll.u32 %s188, 4
    %s198 = int_to_ptr.vmem [resolvable:$true] %s197
    %200 = dma.hbm_to_vmem [thread:$0]  %s187, 2048, %s198, %s189
    %s201 = scalar_lea.hbm %s2, 1024
    %s202 = scalar_lea.vmem [#allocation2], 64
    %s203 = scalar_lea.sflag [#allocation5], 1
    // Predicated region
    $region34: #{tpu_custom_call.1} parent=1 // pred_check
      _
    $region35: #{tpu_custom_call.1} parent=1 // pred_check_branch
      %205 = sbr.rel target = $region37
    $region36: #{tpu_custom_call.1} parent=1 // pred_region
      %206 = sst [smem:[#allocation16]] [#allocation31]
      %207 = sst [smem:[#allocation17]] [#allocation30]
    $region37: #{tpu_custom_call.1} parent=1 // pred_fallthru
      _
    %209 = shalt.err (0)
    %s211 = sshll.u32 %s202, 4
    %s212 = int_to_ptr.vmem [resolvable:$true] %s211
    %214 = dma.hbm_to_vmem [thread:$0]  %s201, 1024, %s212, %s203
    %v215 = vld [vmem:[#allocation8] sm:$0xff]
    %s216 = smul.u32 4, 16
    %s217 = smul.u32 %s216, 1
    %s218 = sshll.u32 %s217, 4
    %219 = dma.done [#allocation5], %s218
    %v220 = vpack.c.bf16 %v215, %v215
    %v221 = vld [vmem:[#allocation2] sm:$0xff]
    %v222 = vld [vmem:[#allocation2 + $0x8] sm:$0xff]
    %v223 = vld [vmem:[#allocation2 + $0x10] sm:$0xff]
    %v224 = vld [vmem:[#allocation2 + $0x18] sm:$0xff]
    %v225 = vld [vmem:[#allocation2 + $0x20] sm:$0xff]
    %v226 = vld [vmem:[#allocation2 + $0x28] sm:$0xff]
    %v227 = vld [vmem:[#allocation2 + $0x30] sm:$0xff]
    %v228 = vld [vmem:[#allocation2 + $0x38] sm:$0xff]
    %229 = vmatprep.subr.bf16.mxu0 0
    %230 = vmatpush1.bf16.msra.mxu0 %v221
    %231 = vmatprep.subr.bf16.mxu0 0
    %232 = vmatpush1.bf16.msra.mxu0 %v222
    %233 = vmatprep.subr.bf16.mxu0 0
    %234 = vmatpush1.bf16.msra.mxu0 %v223
    %235 = vmatprep.subr.bf16.mxu0 0
    %236 = vmatpush1.bf16.msra.mxu0 %v224
    %237 = vmatprep.subr.bf16.mxu0 0
    %238 = vmatpush1.bf16.msra.mxu0 %v225
    %239 = vmatprep.subr.bf16.mxu0 0
    %240 = vmatpush1.bf16.msra.mxu0 %v226
    %241 = vmatprep.subr.bf16.mxu0 0
    %242 = vmatpush1.bf16.msra.mxu0 %v227
    %243 = vmatprep.subr.bf16.mxu0 0
    %244 = vmatpush1.bf16.msra.mxu0 %v228
    %245 = vmatprep.subr.bf16.mxu0 0
    %246 = vmatpush1.bf16.msra.mxu0 0
    %247 = vmatprep.subr.bf16.mxu0 0
    %248 = vmatpush1.bf16.msra.mxu0 0
    %249 = vmatprep.subr.bf16.mxu0 0
    %250 = vmatpush1.bf16.msra.mxu0 0
    %251 = vmatprep.subr.bf16.mxu0 0
    %252 = vmatpush1.bf16.msra.mxu0 0
    %253 = vmatprep.subr.bf16.mxu0 0
    %254 = vmatpush1.bf16.msra.mxu0 0
    %255 = vmatprep.subr.bf16.mxu0 0
    %256 = vmatpush1.bf16.msra.mxu0 0
    %257 = vmatprep.subr.bf16.mxu0 0
    %258 = vmatpush1.bf16.msra.mxu0 0
    %259 = vmatprep.subr.bf16.mxu0 0
    %260 = vmatpush1.bf16.msra.mxu0 0
    %261 = vmatprep.mubr.bf16.mxu0 0
    %262 = vmatmul.mubr.bf16.gmra.mrb[0].mxu0 %v220
    %v263 = vpop.f32.mrb[0].mxu0
    %v264 = vadd.f32 0.0, %v263
    %v265 = vpop.f32.mrb[0].mxu0
    %v266 = vpop.f32.mrb[0].mxu0
    %v267 = vpop.f32.mrb[0].mxu0
    %268 = vdwg.mxu0
    %v269 = vld [vmem:[#allocation11] sm:$0xff]
    %v270 = vrot.slane %v264, 4
    %v271 = vadd.f32 %v264, %v270
    %v272 = vrot.slane %v271, 2
    %v273 = vadd.f32 %v271, %v272
    %v274 = vrot.slane %v273, 1
    %v275 = vadd.f32 %v273, %v274
    %v276 = vmul.f32 %v264, %v264
    %v277 = vrot.slane %v276, 4
    %v278 = vadd.f32 %v276, %v277
    %v279 = vrot.slane %v278, 2
    %v280 = vadd.f32 %v278, %v279
    %v281 = vrot.slane %v280, 1
    %v282 = vadd.f32 %v280, %v281
    %v283 = vmul.f32 %v275, 0.125
    %v284 = vmul.f32 %v282, 0.125
    %v285 = vmul.f32 %v283, %v283
    %v286 = vsub.f32 %v284, %v285
    %v287 = vmax.f32 %v286, 0.0
    %v288 = vadd.f32 %v287, 1e-05
    %v289 = vrsqrt.pop %v288
    %v290 = vmul.f32 %v289, %v269
    %v291 = vmul.f32 %v283, %v290
    %v293 = vrot.slane %v291, 7
    %v295 = vsub.f32 %v269, %v293
    %v296 = vlaneseq
    %v297 = vshrl.u32 %v296, 7
    %v298 = vsub.s32 0, %v297
    %v299 = vrot.slane %v290, %v298
    %v300 = vmul.f32 %v264, %v299
    %v301 = vlaneseq
    %v302 = vshrl.u32 %v301, 7
    %v303 = vsub.s32 1, %v302
    %v304 = vrot.slane %v295, %v303
    %v305 = vadd.f32 %v300, %v304
    %v306 = vmax.f32 %v305, 0.0
    %s307 = smul.u32 %s216, 2
    %s308 = sshll.u32 %s307, 4
    %309 = dma.done [#allocation6], %s308
    %v310 = vpack.c.bf16 %v306, %v306
    %v311 = vld [vmem:[#allocation3] sm:$0xff]
    %v312 = vld [vmem:[#allocation3 + $0x8] sm:$0xff]
    %v313 = vld [vmem:[#allocation3 + $0x10] sm:$0xff]
    %v314 = vld [vmem:[#allocation3 + $0x18] sm:$0xff]
    %v315 = vld [vmem:[#allocation3 + $0x20] sm:$0xff]
    %v316 = vld [vmem:[#allocation3 + $0x28] sm:$0xff]
    %v317 = vld [vmem:[#allocation3 + $0x30] sm:$0xff]
    %v318 = vld [vmem:[#allocation3 + $0x38] sm:$0xff]
    %v319 = vld [vmem:[#allocation3 + $0x40] sm:$0xff]
    %v320 = vld [vmem:[#allocation3 + $0x48] sm:$0xff]
    %v321 = vld [vmem:[#allocation3 + $0x50] sm:$0xff]
    %v322 = vld [vmem:[#allocation3 + $0x58] sm:$0xff]
    %v323 = vld [vmem:[#allocation3 + $0x60] sm:$0xff]
    %v324 = vld [vmem:[#allocation3 + $0x68] sm:$0xff]
    %v325 = vld [vmem:[#allocation3 + $0x70] sm:$0xff]
    %v326 = vld [vmem:[#allocation3 + $0x78] sm:$0xff]
    %327 = vmatprep.subr.bf16.mxu0 %v312
    %328 = vmatpush1.bf16.msra.mxu0 %v311
    %329 = vmatprep.subr.bf16.mxu0 %v314
    %330 = vmatpush1.bf16.msra.mxu0 %v313
    %331 = vmatprep.subr.bf16.mxu0 %v316
    %332 = vmatpush1.bf16.msra.mxu0 %v315
    %333 = vmatprep.subr.bf16.mxu0 %v318
    %334 = vmatpush1.bf16.msra.mxu0 %v317
    %335 = vmatprep.subr.bf16.mxu0 %v320
    %336 = vmatpush1.bf16.msra.mxu0 %v319
    %337 = vmatprep.subr.bf16.mxu0 %v322
    %338 = vmatpush1.bf16.msra.mxu0 %v321
    %339 = vmatprep.subr.bf16.mxu0 %v324
    %340 = vmatpush1.bf16.msra.mxu0 %v323
    %341 = vmatprep.subr.bf16.mxu0 %v326
    %342 = vmatpush1.bf16.msra.mxu0 %v325
    %343 = vmatprep.subr.bf16.mxu0 0
    %344 = vmatpush1.bf16.msra.mxu0 0
    %345 = vmatprep.subr.bf16.mxu0 0
    %346 = vmatpush1.bf16.msra.mxu0 0
    %347 = vmatprep.subr.bf16.mxu0 0
    %348 = vmatpush1.bf16.msra.mxu0 0
    %349 = vmatprep.subr.bf16.mxu0 0
    %350 = vmatpush1.bf16.msra.mxu0 0
    %351 = vmatprep.subr.bf16.mxu0 0
    %352 = vmatpush1.bf16.msra.mxu0 0
    %353 = vmatprep.subr.bf16.mxu0 0
    %354 = vmatpush1.bf16.msra.mxu0 0
    %355 = vmatprep.subr.bf16.mxu0 0
    %356 = vmatpush1.bf16.msra.mxu0 0
    %357 = vmatprep.subr.bf16.mxu0 0
    %358 = vmatpush1.bf16.msra.mxu0 0
    %359 = vmatprep.mubr.bf16.mxu0 0
    %360 = vmatmul.mubr.bf16.gmra.mrb[0].mxu0 %v310
    %v361 = vpop.f32.mrb[0].mxu0
    %v362 = vadd.f32 0.0, %v361
    %v363 = vpop.f32.mrb[0].mxu0
    %v364 = vadd.f32 0.0, %v363
    %v365 = vpop.f32.mrb[0].mxu0
    %v366 = vpop.f32.mrb[0].mxu0
    %367 = vdwg.mxu0
    %s368 = scalar_lea.vmem [#allocation11], 16
    %v369 = vld [vmem:[%s368] sm:$0xff]
    %v370 = vld [vmem:[%s368 + $0x8] sm:$0xff]
    %v371 = vrot.slane %v362, 4
    %v372 = vadd.f32 %v362, %v371
    %v373 = vrot.slane %v372, 2
    %v374 = vadd.f32 %v372, %v373
    %v375 = vrot.slane %v374, 1
    %v376 = vadd.f32 %v374, %v375
    %v377 = vrot.slane %v364, 4
    %v378 = vadd.f32 %v364, %v377
    %v379 = vrot.slane %v378, 2
    %v380 = vadd.f32 %v378, %v379
    %v381 = vrot.slane %v380, 1
    %v382 = vadd.f32 %v380, %v381
    %v383 = vmul.f32 %v362, %v362
    %v384 = vmul.f32 %v364, %v364
    %v385 = vrot.slane %v383, 4
    %v386 = vadd.f32 %v383, %v385
    %v387 = vrot.slane %v386, 2
    %v388 = vadd.f32 %v386, %v387
    %v389 = vrot.slane %v388, 1
    %v390 = vadd.f32 %v388, %v389
    %v391 = vrot.slane %v384, 4
    %v392 = vadd.f32 %v384, %v391
    %v393 = vrot.slane %v392, 2
    %v394 = vadd.f32 %v392, %v393
    %v395 = vrot.slane %v394, 1
    %v396 = vadd.f32 %v394, %v395
    %v397 = vmul.f32 %v376, 0.125
    %v398 = vmul.f32 %v382, 0.125
    %v399 = vmul.f32 %v390, 0.125
    %v400 = vmul.f32 %v396, 0.125
    %v401 = vmul.f32 %v397, %v397
    %v402 = vmul.f32 %v398, %v398
    %v403 = vsub.f32 %v399, %v401
    %v404 = vsub.f32 %v400, %v402
    %v405 = vmax.f32 %v403, 0.0
    %v406 = vmax.f32 %v404, 0.0
    %v407 = vadd.f32 %v405, 1e-05
    %v408 = vadd.f32 %v406, 1e-05
    %v409 = vrsqrt.pop %v407
    %v410 = vrsqrt.pop %v408
    %v411 = vmul.f32 %v409, %v369
    %v412 = vmul.f32 %v410, %v370
    %v413 = vmul.f32 %v397, %v411
    %v414 = vmul.f32 %v398, %v412
    %v417 = vrot.slane %v413, 7
    %v418 = vrot.slane %v414, 7
    %v421 = vsub.f32 %v369, %v417
    %v422 = vsub.f32 %v370, %v418
    %v423 = vlaneseq
    %v424 = vshrl.u32 %v423, 7
    %v425 = vsub.s32 0, %v424
    %v426 = vrot.slane %v411, %v425
    %v427 = vlaneseq
    %v428 = vshrl.u32 %v427, 7
    %v429 = vsub.s32 0, %v428
    %v430 = vrot.slane %v412, %v429
    %v431 = vmul.f32 %v362, %v426
    %v432 = vmul.f32 %v364, %v430
    %v433 = vlaneseq
    %v434 = vshrl.u32 %v433, 7
    %v435 = vsub.s32 1, %v434
    %v436 = vrot.slane %v421, %v435
    %v437 = vlaneseq
    %v438 = vshrl.u32 %v437, 7
    %v439 = vsub.s32 1, %v438
    %v440 = vrot.slane %v422, %v439
    %v441 = vadd.f32 %v431, %v436
    %v442 = vadd.f32 %v432, %v440
    %v443 = vmax.f32 %v441, 0.0
    %v444 = vmax.f32 %v442, 0.0
    %s445 = smul.u32 4, 32
    %s446 = smul.u32 %s445, 1
    %s447 = sshll.u32 %s446, 4
    %448 = dma.done [#allocation7], %s447
    %v449 = vpack.c.bf16 %v443, %v443
    %v450 = vpack.c.bf16 %v444, %v444
    %v451 = vld [vmem:[#allocation4] sm:$0xff]
    %v452 = vld [vmem:[#allocation4 + $0x8] sm:$0xff]
    %v453 = vld [vmem:[#allocation4 + $0x10] sm:$0xff]
    %v454 = vld [vmem:[#allocation4 + $0x18] sm:$0xff]
    %v455 = vld [vmem:[#allocation4 + $0x20] sm:$0xff]
    %v456 = vld [vmem:[#allocation4 + $0x28] sm:$0xff]
    %v457 = vld [vmem:[#allocation4 + $0x30] sm:$0xff]
    %v458 = vld [vmem:[#allocation4 + $0x38] sm:$0xff]
    %v459 = vld [vmem:[#allocation4 + $0x40] sm:$0xff]
    %v460 = vld [vmem:[#allocation4 + $0x48] sm:$0xff]
    %v461 = vld [vmem:[#allocation4 + $0x50] sm:$0xff]
    %v462 = vld [vmem:[#allocation4 + $0x58] sm:$0xff]
    %v463 = vld [vmem:[#allocation4 + $0x60] sm:$0xff]
    %v464 = vld [vmem:[#allocation4 + $0x68] sm:$0xff]
    %v465 = vld [vmem:[#allocation4 + $0x70] sm:$0xff]
    %v466 = vld [vmem:[#allocation4 + $0x78] sm:$0xff]
    %467 = vmatprep.subr.bf16.mxu0 0
    %468 = vmatpush1.bf16.msra.mxu0 %v451
    %469 = vmatprep.subr.bf16.mxu0 0
    %470 = vmatpush1.bf16.msra.mxu0 %v452
    %471 = vmatprep.subr.bf16.mxu0 0
    %472 = vmatpush1.bf16.msra.mxu0 %v453
    %473 = vmatprep.subr.bf16.mxu0 0
    %474 = vmatpush1.bf16.msra.mxu0 %v454
    %475 = vmatprep.subr.bf16.mxu0 0
    %476 = vmatpush1.bf16.msra.mxu0 %v455
    %477 = vmatprep.subr.bf16.mxu0 0
    %478 = vmatpush1.bf16.msra.mxu0 %v456
    %479 = vmatprep.subr.bf16.mxu0 0
    %480 = vmatpush1.bf16.msra.mxu0 %v457
    %481 = vmatprep.subr.bf16.mxu0 0
    %482 = vmatpush1.bf16.msra.mxu0 %v458
    %483 = vmatprep.subr.bf16.mxu0 0
    %484 = vmatpush1.bf16.msra.mxu0 %v459
    %485 = vmatprep.subr.bf16.mxu0 0
    %486 = vmatpush1.bf16.msra.mxu0 %v460
    %487 = vmatprep.subr.bf16.mxu0 0
    %488 = vmatpush1.bf16.msra.mxu0 %v461
    %489 = vmatprep.subr.bf16.mxu0 0
    %490 = vmatpush1.bf16.msra.mxu0 %v462
    %491 = vmatprep.subr.bf16.mxu0 0
    %492 = vmatpush1.bf16.msra.mxu0 %v463
    %493 = vmatprep.subr.bf16.mxu0 0
    %494 = vmatpush1.bf16.msra.mxu0 %v464
    %495 = vmatprep.subr.bf16.mxu0 0
    %496 = vmatpush1.bf16.msra.mxu0 %v465
    %497 = vmatprep.subr.bf16.mxu0 0
    %498 = vmatpush1.bf16.msra.mxu0 %v466
    %499 = vmatprep.mubr.bf16.mxu0 %v450
    %500 = vmatmul.mubr.bf16.gmra.mrb[0].mxu0 %v449
    %v501 = vpop.f32.mrb[0].mxu0
    %v502 = vadd.f32 0.0, %v501
    %v503 = vpop.f32.mrb[0].mxu0
    %v504 = vpop.f32.mrb[0].mxu0
    %v505 = vpop.f32.mrb[0].mxu0
    %506 = vdwg.mxu0
    %s507 = scalar_lea.vmem [#allocation11], 32
    %v508 = vld [vmem:[%s507] sm:$0xff]
    %v509 = vrot.slane %v502, 4
    %v510 = vadd.f32 %v502, %v509
    %v511 = vrot.slane %v510, 2
    %v512 = vadd.f32 %v510, %v511
    %v513 = vrot.slane %v512, 1
    %v514 = vadd.f32 %v512, %v513
    %v515 = vmul.f32 %v502, %v502
    %v516 = vrot.slane %v515, 4
    %v517 = vadd.f32 %v515, %v516
    %v518 = vrot.slane %v517, 2
    %v519 = vadd.f32 %v517, %v518
    %v520 = vrot.slane %v519, 1
    %v521 = vadd.f32 %v519, %v520
    %v522 = vmul.f32 %v514, 0.125
    %v523 = vmul.f32 %v521, 0.125
    %v524 = vmul.f32 %v522, %v522
    %v525 = vsub.f32 %v523, %v524
    %v526 = vmax.f32 %v525, 0.0
    %v527 = vadd.f32 %v526, 1e-05
    %v528 = vrsqrt.pop %v527
    %v529 = vmul.f32 %v528, %v508
    %v530 = vmul.f32 %v522, %v529
    %v532 = vrot.slane %v530, 7
    %v534 = vsub.f32 %v508, %v532
    %v535 = vlaneseq
    %v536 = vshrl.u32 %v535, 7
    %v537 = vsub.s32 0, %v536
    %v538 = vrot.slane %v529, %v537
    %v539 = vmul.f32 %v502, %v538
    %v540 = vlaneseq
    %v541 = vshrl.u32 %v540, 7
    %v542 = vsub.s32 1, %v541
    %v543 = vrot.slane %v534, %v542
    %v544 = vadd.f32 %v539, %v543
    %v545 = vmax.f32 %v544, 0.0
    %v546 = vadd.f32 %v545, %v306
    %s547 = sshll.u32 %s307, 4
    %548 = dma.done %s101, %s547
    %v549 = vpack.c.bf16 %v546, %v546
    %v550 = vld [vmem:[%s100] sm:$0xff]
    %v551 = vld [vmem:[%s100 + $0x8] sm:$0xff]
    %v552 = vld [vmem:[%s100 + $0x10] sm:$0xff]
    %v553 = vld [vmem:[%s100 + $0x18] sm:$0xff]
    %v554 = vld [vmem:[%s100 + $0x20] sm:$0xff]
    %v555 = vld [vmem:[%s100 + $0x28] sm:$0xff]
    %v556 = vld [vmem:[%s100 + $0x30] sm:$0xff]
    %v557 = vld [vmem:[%s100 + $0x38] sm:$0xff]
    %v558 = vld [vmem:[%s100 + $0x40] sm:$0xff]
    %v559 = vld [vmem:[%s100 + $0x48] sm:$0xff]
    %v560 = vld [vmem:[%s100 + $0x50] sm:$0xff]
    %v561 = vld [vmem:[%s100 + $0x58] sm:$0xff]
    %v562 = vld [vmem:[%s100 + $0x60] sm:$0xff]
    %v563 = vld [vmem:[%s100 + $0x68] sm:$0xff]
    %v564 = vld [vmem:[%s100 + $0x70] sm:$0xff]
    %v565 = vld [vmem:[%s100 + $0x78] sm:$0xff]
    %566 = vmatprep.subr.bf16.mxu0 %v551
    %567 = vmatpush1.bf16.msra.mxu0 %v550
    %568 = vmatprep.subr.bf16.mxu0 %v553
    %569 = vmatpush1.bf16.msra.mxu0 %v552
    %570 = vmatprep.subr.bf16.mxu0 %v555
    %571 = vmatpush1.bf16.msra.mxu0 %v554
    %572 = vmatprep.subr.bf16.mxu0 %v557
    %573 = vmatpush1.bf16.msra.mxu0 %v556
    %574 = vmatprep.subr.bf16.mxu0 %v559
    %575 = vmatpush1.bf16.msra.mxu0 %v558
    %576 = vmatprep.subr.bf16.mxu0 %v561
    %577 = vmatpush1.bf16.msra.mxu0 %v560
    %578 = vmatprep.subr.bf16.mxu0 %v563
    %579 = vmatpush1.bf16.msra.mxu0 %v562
    %580 = vmatprep.subr.bf16.mxu0 %v565
    %581 = vmatpush1.bf16.msra.mxu0 %v564
    %582 = vmatprep.subr.bf16.mxu0 0
    %583 = vmatpush1.bf16.msra.mxu0 0
    %584 = vmatprep.subr.bf16.mxu0 0
    %585 = vmatpush1.bf16.msra.mxu0 0
    %586 = vmatprep.subr.bf16.mxu0 0
    %587 = vmatpush1.bf16.msra.mxu0 0
    %588 = vmatprep.subr.bf16.mxu0 0
    %589 = vmatpush1.bf16.msra.mxu0 0
    %590 = vmatprep.subr.bf16.mxu0 0
    %591 = vmatpush1.bf16.msra.mxu0 0
    %592 = vmatprep.subr.bf16.mxu0 0
    %593 = vmatpush1.bf16.msra.mxu0 0
    %594 = vmatprep.subr.bf16.mxu0 0
    %595 = vmatpush1.bf16.msra.mxu0 0
    %596 = vmatprep.subr.bf16.mxu0 0
    %597 = vmatpush1.bf16.msra.mxu0 0
    %598 = vmatprep.mubr.bf16.mxu0 0
    %599 = vmatmul.mubr.bf16.gmra.mrb[0].mxu0 %v549
    %v600 = vpop.f32.mrb[0].mxu0
    %v601 = vadd.f32 0.0, %v600
    %v602 = vpop.f32.mrb[0].mxu0
    %v603 = vadd.f32 0.0, %v602
    %v604 = vpop.f32.mrb[0].mxu0
    %v605 = vpop.f32.mrb[0].mxu0
    %606 = vdwg.mxu0
    %s607 = scalar_lea.vmem [#allocation11], 48
    %v608 = vld [vmem:[%s607] sm:$0xff]
    %v609 = vld [vmem:[%s607 + $0x8] sm:$0xff]
    %v610 = vrot.slane %v601, 4
    %v611 = vadd.f32 %v601, %v610
    %v612 = vrot.slane %v611, 2
    %v613 = vadd.f32 %v611, %v612
    %v614 = vrot.slane %v613, 1
    %v615 = vadd.f32 %v613, %v614
    %v616 = vrot.slane %v603, 4
    %v617 = vadd.f32 %v603, %v616
    %v618 = vrot.slane %v617, 2
    %v619 = vadd.f32 %v617, %v618
    %v620 = vrot.slane %v619, 1
    %v621 = vadd.f32 %v619, %v620
    %v622 = vmul.f32 %v601, %v601
    %v623 = vmul.f32 %v603, %v603
    %v624 = vrot.slane %v622, 4
    %v625 = vadd.f32 %v622, %v624
    %v626 = vrot.slane %v625, 2
    %v627 = vadd.f32 %v625, %v626
    %v628 = vrot.slane %v627, 1
    %v629 = vadd.f32 %v627, %v628
    %v630 = vrot.slane %v623, 4
    %v631 = vadd.f32 %v623, %v630
    %v632 = vrot.slane %v631, 2
    %v633 = vadd.f32 %v631, %v632
    %v634 = vrot.slane %v633, 1
    %v635 = vadd.f32 %v633, %v634
    %v636 = vmul.f32 %v615, 0.125
    %v637 = vmul.f32 %v621, 0.125
    %v638 = vmul.f32 %v629, 0.125
    %v639 = vmul.f32 %v635, 0.125
    %v640 = vmul.f32 %v636, %v636
    %v641 = vmul.f32 %v637, %v637
    %v642 = vsub.f32 %v638, %v640
    %v643 = vsub.f32 %v639, %v641
    %v644 = vmax.f32 %v642, 0.0
    %v645 = vmax.f32 %v643, 0.0
    %v646 = vadd.f32 %v644, 1e-05
    %v647 = vadd.f32 %v645, 1e-05
    %v648 = vrsqrt.pop %v646
    %v649 = vrsqrt.pop %v647
    %v650 = vmul.f32 %v648, %v608
    %v651 = vmul.f32 %v649, %v609
    %v652 = vmul.f32 %v636, %v650
    %v653 = vmul.f32 %v637, %v651
    %v656 = vrot.slane %v652, 7
    %v657 = vrot.slane %v653, 7
    %v660 = vsub.f32 %v608, %v656
    %v661 = vsub.f32 %v609, %v657
    %v662 = vlaneseq
    %v663 = vshrl.u32 %v662, 7
    %v664 = vsub.s32 0, %v663
    %v665 = vrot.slane %v650, %v664
    %v666 = vlaneseq
    %v667 = vshrl.u32 %v666, 7
    %v668 = vsub.s32 0, %v667
    %v669 = vrot.slane %v651, %v668
    %v670 = vmul.f32 %v601, %v665
    %v671 = vmul.f32 %v603, %v669
    %v672 = vlaneseq
    %v673 = vshrl.u32 %v672, 7
    %v674 = vsub.s32 1, %v673
    %v675 = vrot.slane %v660, %v674
    %v676 = vlaneseq
    %v677 = vshrl.u32 %v676, 7
    %v678 = vsub.s32 1, %v677
    %v679 = vrot.slane %v661, %v678
    %v680 = vadd.f32 %v670, %v675
    %v681 = vadd.f32 %v671, %v679
    %v682 = vmax.f32 %v680, 0.0
    %v683 = vmax.f32 %v681, 0.0
    %s684 = sshll.u32 %s446, 4
    %685 = dma.done %s138, %s684
    %v686 = vpack.c.bf16 %v682, %v682
    %v687 = vpack.c.bf16 %v683, %v683
    %v688 = vld [vmem:[%s137] sm:$0xff]
    %v689 = vld [vmem:[%s137 + $0x8] sm:$0xff]
    %v690 = vld [vmem:[%s137 + $0x10] sm:$0xff]
    %v691 = vld [vmem:[%s137 + $0x18] sm:$0xff]
    %v692 = vld [vmem:[%s137 + $0x20] sm:$0xff]
    %v693 = vld [vmem:[%s137 + $0x28] sm:$0xff]
    %v694 = vld [vmem:[%s137 + $0x30] sm:$0xff]
    %v695 = vld [vmem:[%s137 + $0x38] sm:$0xff]
    %v696 = vld [vmem:[%s137 + $0x40] sm:$0xff]
    %v697 = vld [vmem:[%s137 + $0x48] sm:$0xff]
    %v698 = vld [vmem:[%s137 + $0x50] sm:$0xff]
    %v699 = vld [vmem:[%s137 + $0x58] sm:$0xff]
    %v700 = vld [vmem:[%s137 + $0x60] sm:$0xff]
    %v701 = vld [vmem:[%s137 + $0x68] sm:$0xff]
    %v702 = vld [vmem:[%s137 + $0x70] sm:$0xff]
    %v703 = vld [vmem:[%s137 + $0x78] sm:$0xff]
    %704 = vmatprep.subr.bf16.mxu0 0
    %705 = vmatpush1.bf16.msra.mxu0 %v688
    %706 = vmatprep.subr.bf16.mxu0 0
    %707 = vmatpush1.bf16.msra.mxu0 %v689
    %708 = vmatprep.subr.bf16.mxu0 0
    %709 = vmatpush1.bf16.msra.mxu0 %v690
    %710 = vmatprep.subr.bf16.mxu0 0
    %711 = vmatpush1.bf16.msra.mxu0 %v691
    %712 = vmatprep.subr.bf16.mxu0 0
    %713 = vmatpush1.bf16.msra.mxu0 %v692
    %714 = vmatprep.subr.bf16.mxu0 0
    %715 = vmatpush1.bf16.msra.mxu0 %v693
    %716 = vmatprep.subr.bf16.mxu0 0
    %717 = vmatpush1.bf16.msra.mxu0 %v694
    %718 = vmatprep.subr.bf16.mxu0 0
    %719 = vmatpush1.bf16.msra.mxu0 %v695
    %720 = vmatprep.subr.bf16.mxu0 0
    %721 = vmatpush1.bf16.msra.mxu0 %v696
    %722 = vmatprep.subr.bf16.mxu0 0
    %723 = vmatpush1.bf16.msra.mxu0 %v697
    %724 = vmatprep.subr.bf16.mxu0 0
    %725 = vmatpush1.bf16.msra.mxu0 %v698
    %726 = vmatprep.subr.bf16.mxu0 0
    %727 = vmatpush1.bf16.msra.mxu0 %v699
    %728 = vmatprep.subr.bf16.mxu0 0
    %729 = vmatpush1.bf16.msra.mxu0 %v700
    %730 = vmatprep.subr.bf16.mxu0 0
    %731 = vmatpush1.bf16.msra.mxu0 %v701
    %732 = vmatprep.subr.bf16.mxu0 0
    %733 = vmatpush1.bf16.msra.mxu0 %v702
    %734 = vmatprep.subr.bf16.mxu0 0
    %735 = vmatpush1.bf16.msra.mxu0 %v703
    %736 = vmatprep.mubr.bf16.mxu0 %v687
    %737 = vmatmul.mubr.bf16.gmra.mrb[0].mxu0 %v686
    %v738 = vpop.f32.mrb[0].mxu0
    %v739 = vadd.f32 0.0, %v738
    %v740 = vpop.f32.mrb[0].mxu0
    %v741 = vpop.f32.mrb[0].mxu0
    %v742 = vpop.f32.mrb[0].mxu0
    %743 = vdwg.mxu0
    %s744 = scalar_lea.vmem [#allocation11], 64
    %v745 = vld [vmem:[%s744] sm:$0xff]
    %v746 = vrot.slane %v739, 4
    %v747 = vadd.f32 %v739, %v746
    %v748 = vrot.slane %v747, 2
    %v749 = vadd.f32 %v747, %v748
    %v750 = vrot.slane %v749, 1
    %v751 = vadd.f32 %v749, %v750
    %v752 = vmul.f32 %v739, %v739
    %v753 = vrot.slane %v752, 4
    %v754 = vadd.f32 %v752, %v753
    %v755 = vrot.slane %v754, 2
    %v756 = vadd.f32 %v754, %v755
    %v757 = vrot.slane %v756, 1
    %v758 = vadd.f32 %v756, %v757
    %v759 = vmul.f32 %v751, 0.125
    %v760 = vmul.f32 %v758, 0.125
    %v761 = vmul.f32 %v759, %v759
    %v762 = vsub.f32 %v760, %v761
    %v763 = vmax.f32 %v762, 0.0
    %v764 = vadd.f32 %v763, 1e-05
    %v765 = vrsqrt.pop %v764
    %v766 = vmul.f32 %v765, %v745
    %v767 = vmul.f32 %v759, %v766
    %v769 = vrot.slane %v767, 7
    %v771 = vsub.f32 %v745, %v769
    %v772 = vlaneseq
    %v773 = vshrl.u32 %v772, 7
    %v774 = vsub.s32 0, %v773
    %v775 = vrot.slane %v766, %v774
    %v776 = vmul.f32 %v739, %v775
    %v777 = vlaneseq
    %v778 = vshrl.u32 %v777, 7
    %v779 = vsub.s32 1, %v778
    %v780 = vrot.slane %v771, %v779
    %v781 = vadd.f32 %v776, %v780
    %v782 = vmax.f32 %v781, 0.0
    %v783 = vadd.f32 %v782, %v546
    %s784 = sshll.u32 %s307, 4
    %785 = dma.done %s152, %s784
    %v786 = vpack.c.bf16 %v783, %v783
    %v787 = vld [vmem:[%s151] sm:$0xff]
    %v788 = vld [vmem:[%s151 + $0x8] sm:$0xff]
    %v789 = vld [vmem:[%s151 + $0x10] sm:$0xff]
    %v790 = vld [vmem:[%s151 + $0x18] sm:$0xff]
    %v791 = vld [vmem:[%s151 + $0x20] sm:$0xff]
    %v792 = vld [vmem:[%s151 + $0x28] sm:$0xff]
    %v793 = vld [vmem:[%s151 + $0x30] sm:$0xff]
    %v794 = vld [vmem:[%s151 + $0x38] sm:$0xff]
    %v795 = vld [vmem:[%s151 + $0x40] sm:$0xff]
    %v796 = vld [vmem:[%s151 + $0x48] sm:$0xff]
    %v797 = vld [vmem:[%s151 + $0x50] sm:$0xff]
    %v798 = vld [vmem:[%s151 + $0x58] sm:$0xff]
    %v799 = vld [vmem:[%s151 + $0x60] sm:$0xff]
    %v800 = vld [vmem:[%s151 + $0x68] sm:$0xff]
    %v801 = vld [vmem:[%s151 + $0x70] sm:$0xff]
    %v802 = vld [vmem:[%s151 + $0x78] sm:$0xff]
    %803 = vmatprep.subr.bf16.mxu0 %v788
    %804 = vmatpush1.bf16.msra.mxu0 %v787
    %805 = vmatprep.subr.bf16.mxu0 %v790
    %806 = vmatpush1.bf16.msra.mxu0 %v789
    %807 = vmatprep.subr.bf16.mxu0 %v792
    %808 = vmatpush1.bf16.msra.mxu0 %v791
    %809 = vmatprep.subr.bf16.mxu0 %v794
    %810 = vmatpush1.bf16.msra.mxu0 %v793
    %811 = vmatprep.subr.bf16.mxu0 %v796
    %812 = vmatpush1.bf16.msra.mxu0 %v795
    %813 = vmatprep.subr.bf16.mxu0 %v798
    %814 = vmatpush1.bf16.msra.mxu0 %v797
    %815 = vmatprep.subr.bf16.mxu0 %v800
    %816 = vmatpush1.bf16.msra.mxu0 %v799
    %817 = vmatprep.subr.bf16.mxu0 %v802
    %818 = vmatpush1.bf16.msra.mxu0 %v801
    %819 = vmatprep.subr.bf16.mxu0 0
    %820 = vmatpush1.bf16.msra.mxu0 0
    %821 = vmatprep.subr.bf16.mxu0 0
    %822 = vmatpush1.bf16.msra.mxu0 0
    %823 = vmatprep.subr.bf16.mxu0 0
    %824 = vmatpush1.bf16.msra.mxu0 0
    %825 = vmatprep.subr.bf16.mxu0 0
    %826 = vmatpush1.bf16.msra.mxu0 0
    %827 = vmatprep.subr.bf16.mxu0 0
    %828 = vmatpush1.bf16.msra.mxu0 0
    %829 = vmatprep.subr.bf16.mxu0 0
    %830 = vmatpush1.bf16.msra.mxu0 0
    %831 = vmatprep.subr.bf16.mxu0 0
    %832 = vmatpush1.bf16.msra.mxu0 0
    %833 = vmatprep.subr.bf16.mxu0 0
    %834 = vmatpush1.bf16.msra.mxu0 0
    %835 = vmatprep.mubr.bf16.mxu0 0
    %836 = vmatmul.mubr.bf16.gmra.mrb[0].mxu0 %v786
    %v837 = vpop.f32.mrb[0].mxu0
    %v838 = vadd.f32 0.0, %v837
    %v839 = vpop.f32.mrb[0].mxu0
    %v840 = vadd.f32 0.0, %v839
    %v841 = vpop.f32.mrb[0].mxu0
    %v842 = vpop.f32.mrb[0].mxu0
    %843 = vdwg.mxu0
    %s844 = scalar_lea.vmem [#allocation11], 80
    %v845 = vld [vmem:[%s844] sm:$0xff]
    %v846 = vld [vmem:[%s844 + $0x8] sm:$0xff]
    %v847 = vrot.slane %v838, 4
    %v848 = vadd.f32 %v838, %v847
    %v849 = vrot.slane %v848, 2
    %v850 = vadd.f32 %v848, %v849
    %v851 = vrot.slane %v850, 1
    %v852 = vadd.f32 %v850, %v851
    %v853 = vrot.slane %v840, 4
    %v854 = vadd.f32 %v840, %v853
    %v855 = vrot.slane %v854, 2
    %v856 = vadd.f32 %v854, %v855
    %v857 = vrot.slane %v856, 1
    %v858 = vadd.f32 %v856, %v857
    %v859 = vmul.f32 %v838, %v838
    %v860 = vmul.f32 %v840, %v840
    %v861 = vrot.slane %v859, 4
    %v862 = vadd.f32 %v859, %v861
    %v863 = vrot.slane %v862, 2
    %v864 = vadd.f32 %v862, %v863
    %v865 = vrot.slane %v864, 1
    %v866 = vadd.f32 %v864, %v865
    %v867 = vrot.slane %v860, 4
    %v868 = vadd.f32 %v860, %v867
    %v869 = vrot.slane %v868, 2
    %v870 = vadd.f32 %v868, %v869
    %v871 = vrot.slane %v870, 1
    %v872 = vadd.f32 %v870, %v871
    %v873 = vmul.f32 %v852, 0.125
    %v874 = vmul.f32 %v858, 0.125
    %v875 = vmul.f32 %v866, 0.125
    %v876 = vmul.f32 %v872, 0.125
    %v877 = vmul.f32 %v873, %v873
    %v878 = vmul.f32 %v874, %v874
    %v879 = vsub.f32 %v875, %v877
    %v880 = vsub.f32 %v876, %v878
    %v881 = vmax.f32 %v879, 0.0
    %v882 = vmax.f32 %v880, 0.0
    %v883 = vadd.f32 %v881, 1e-05
    %v884 = vadd.f32 %v882, 1e-05
    %v885 = vrsqrt.pop %v883
    %v886 = vrsqrt.pop %v884
    %v887 = vmul.f32 %v885, %v845
    %v888 = vmul.f32 %v886, %v846
    %v889 = vmul.f32 %v873, %v887
    %v890 = vmul.f32 %v874, %v888
    %v893 = vrot.slane %v889, 7
    %v894 = vrot.slane %v890, 7
    %v897 = vsub.f32 %v845, %v893
    %v898 = vsub.f32 %v846, %v894
    %v899 = vlaneseq
    %v900 = vshrl.u32 %v899, 7
    %v901 = vsub.s32 0, %v900
    %v902 = vrot.slane %v887, %v901
    %v903 = vlaneseq
    %v904 = vshrl.u32 %v903, 7
    %v905 = vsub.s32 0, %v904
    %v906 = vrot.slane %v888, %v905
    %v907 = vmul.f32 %v838, %v902
    %v908 = vmul.f32 %v840, %v906
    %v909 = vlaneseq
    %v910 = vshrl.u32 %v909, 7
    %v911 = vsub.s32 1, %v910
    %v912 = vrot.slane %v897, %v911
    %v913 = vlaneseq
    %v914 = vshrl.u32 %v913, 7
    %v915 = vsub.s32 1, %v914
    %v916 = vrot.slane %v898, %v915
    %v917 = vadd.f32 %v907, %v912
    %v918 = vadd.f32 %v908, %v916
    %v919 = vmax.f32 %v917, 0.0
    %v920 = vmax.f32 %v918, 0.0
    %s921 = sshll.u32 %s446, 4
    %922 = dma.done %s189, %s921
    %v923 = vpack.c.bf16 %v919, %v919
    %v924 = vpack.c.bf16 %v920, %v920
    %v925 = vld [vmem:[%s188] sm:$0xff]
    %v926 = vld [vmem:[%s188 + $0x8] sm:$0xff]
    %v927 = vld [vmem:[%s188 + $0x10] sm:$0xff]
    %v928 = vld [vmem:[%s188 + $0x18] sm:$0xff]
    %v929 = vld [vmem:[%s188 + $0x20] sm:$0xff]
    %v930 = vld [vmem:[%s188 + $0x28] sm:$0xff]
    %v931 = vld [vmem:[%s188 + $0x30] sm:$0xff]
    %v932 = vld [vmem:[%s188 + $0x38] sm:$0xff]
    %v933 = vld [vmem:[%s188 + $0x40] sm:$0xff]
    %v934 = vld [vmem:[%s188 + $0x48] sm:$0xff]
    %v935 = vld [vmem:[%s188 + $0x50] sm:$0xff]
    %v936 = vld [vmem:[%s188 + $0x58] sm:$0xff]
    %v937 = vld [vmem:[%s188 + $0x60] sm:$0xff]
    %v938 = vld [vmem:[%s188 + $0x68] sm:$0xff]
    %v939 = vld [vmem:[%s188 + $0x70] sm:$0xff]
    %v940 = vld [vmem:[%s188 + $0x78] sm:$0xff]
    %941 = vmatprep.subr.bf16.mxu0 0
    %942 = vmatpush1.bf16.msra.mxu0 %v925
    %943 = vmatprep.subr.bf16.mxu0 0
    %944 = vmatpush1.bf16.msra.mxu0 %v926
    %945 = vmatprep.subr.bf16.mxu0 0
    %946 = vmatpush1.bf16.msra.mxu0 %v927
    %947 = vmatprep.subr.bf16.mxu0 0
    %948 = vmatpush1.bf16.msra.mxu0 %v928
    %949 = vmatprep.subr.bf16.mxu0 0
    %950 = vmatpush1.bf16.msra.mxu0 %v929
    %951 = vmatprep.subr.bf16.mxu0 0
    %952 = vmatpush1.bf16.msra.mxu0 %v930
    %953 = vmatprep.subr.bf16.mxu0 0
    %954 = vmatpush1.bf16.msra.mxu0 %v931
    %955 = vmatprep.subr.bf16.mxu0 0
    %956 = vmatpush1.bf16.msra.mxu0 %v932
    %957 = vmatprep.subr.bf16.mxu0 0
    %958 = vmatpush1.bf16.msra.mxu0 %v933
    %959 = vmatprep.subr.bf16.mxu0 0
    %960 = vmatpush1.bf16.msra.mxu0 %v934
    %961 = vmatprep.subr.bf16.mxu0 0
    %962 = vmatpush1.bf16.msra.mxu0 %v935
    %963 = vmatprep.subr.bf16.mxu0 0
    %964 = vmatpush1.bf16.msra.mxu0 %v936
    %965 = vmatprep.subr.bf16.mxu0 0
    %966 = vmatpush1.bf16.msra.mxu0 %v937
    %967 = vmatprep.subr.bf16.mxu0 0
    %968 = vmatpush1.bf16.msra.mxu0 %v938
    %969 = vmatprep.subr.bf16.mxu0 0
    %970 = vmatpush1.bf16.msra.mxu0 %v939
    %971 = vmatprep.subr.bf16.mxu0 0
    %972 = vmatpush1.bf16.msra.mxu0 %v940
    %973 = vmatprep.mubr.bf16.mxu0 %v924
    %974 = vmatmul.mubr.bf16.gmra.mrb[0].mxu0 %v923
    %v975 = vpop.f32.mrb[0].mxu0
    %v976 = vadd.f32 0.0, %v975
    %v977 = vpop.f32.mrb[0].mxu0
    %v978 = vpop.f32.mrb[0].mxu0
    %v979 = vpop.f32.mrb[0].mxu0
    %980 = vdwg.mxu0
    %s981 = scalar_lea.vmem [#allocation11], 96
    %v982 = vld [vmem:[%s981] sm:$0xff]
    %v983 = vrot.slane %v976, 4
    %v984 = vadd.f32 %v976, %v983
    %v985 = vrot.slane %v984, 2
    %v986 = vadd.f32 %v984, %v985
    %v987 = vrot.slane %v986, 1
    %v988 = vadd.f32 %v986, %v987
    %v989 = vmul.f32 %v976, %v976
    %v990 = vrot.slane %v989, 4
    %v991 = vadd.f32 %v989, %v990
    %v992 = vrot.slane %v991, 2
    %v993 = vadd.f32 %v991, %v992
    %v994 = vrot.slane %v993, 1
    %v995 = vadd.f32 %v993, %v994
    %v996 = vmul.f32 %v988, 0.125
    %v997 = vmul.f32 %v995, 0.125
    %v998 = vmul.f32 %v996, %v996
    %v999 = vsub.f32 %v997, %v998
    %v1000 = vmax.f32 %v999, 0.0
    %v1001 = vadd.f32 %v1000, 1e-05
    %v1002 = vrsqrt.pop %v1001
    %v1003 = vmul.f32 %v1002, %v982
    %v1004 = vmul.f32 %v996, %v1003
    %v1006 = vrot.slane %v1004, 7
    %v1008 = vsub.f32 %v982, %v1006
    %v1009 = vlaneseq
    %v1010 = vshrl.u32 %v1009, 7
    %v1011 = vsub.s32 0, %v1010
    %v1012 = vrot.slane %v1003, %v1011
    %v1013 = vmul.f32 %v976, %v1012
    %v1014 = vlaneseq
    %v1015 = vshrl.u32 %v1014, 7
    %v1016 = vsub.s32 1, %v1015
    %v1017 = vrot.slane %v1008, %v1016
    %v1018 = vadd.f32 %v1013, %v1017
    %v1019 = vmax.f32 %v1018, 0.0
    %v1020 = vadd.f32 %v1019, %v783
    %s1021 = sshll.u32 %s217, 4
    %1022 = dma.done %s203, %s1021
    %v1023 = vpack.c.bf16 %v1020, %v1020
    %v1024 = vld [vmem:[%s202] sm:$0xff]
    %v1025 = vld [vmem:[%s202 + $0x8] sm:$0xff]
    %v1026 = vld [vmem:[%s202 + $0x10] sm:$0xff]
    %v1027 = vld [vmem:[%s202 + $0x18] sm:$0xff]
    %v1028 = vld [vmem:[%s202 + $0x20] sm:$0xff]
    %v1029 = vld [vmem:[%s202 + $0x28] sm:$0xff]
    %v1030 = vld [vmem:[%s202 + $0x30] sm:$0xff]
    %v1031 = vld [vmem:[%s202 + $0x38] sm:$0xff]
    %1032 = vmatprep.subr.bf16.mxu0 0
    %1033 = vmatpush1.bf16.msra.mxu0 %v1024
    %1034 = vmatprep.subr.bf16.mxu0 0
    %1035 = vmatpush1.bf16.msra.mxu0 %v1025
    %1036 = vmatprep.subr.bf16.mxu0 0
    %1037 = vmatpush1.bf16.msra.mxu0 %v1026
    %1038 = vmatprep.subr.bf16.mxu0 0
    %1039 = vmatpush1.bf16.msra.mxu0 %v1027
    %1040 = vmatprep.subr.bf16.mxu0 0
    %1041 = vmatpush1.bf16.msra.mxu0 %v1028
    %1042 = vmatprep.subr.bf16.mxu0 0
    %1043 = vmatpush1.bf16.msra.mxu0 %v1029
    %1044 = vmatprep.subr.bf16.mxu0 0
    %1045 = vmatpush1.bf16.msra.mxu0 %v1030
    %1046 = vmatprep.subr.bf16.mxu0 0
    %1047 = vmatpush1.bf16.msra.mxu0 %v1031
    %1048 = vmatprep.subr.bf16.mxu0 0
    %1049 = vmatpush1.bf16.msra.mxu0 0
    %1050 = vmatprep.subr.bf16.mxu0 0
    %1051 = vmatpush1.bf16.msra.mxu0 0
    %1052 = vmatprep.subr.bf16.mxu0 0
    %1053 = vmatpush1.bf16.msra.mxu0 0
    %1054 = vmatprep.subr.bf16.mxu0 0
    %1055 = vmatpush1.bf16.msra.mxu0 0
    %1056 = vmatprep.subr.bf16.mxu0 0
    %1057 = vmatpush1.bf16.msra.mxu0 0
    %1058 = vmatprep.subr.bf16.mxu0 0
    %1059 = vmatpush1.bf16.msra.mxu0 0
    %1060 = vmatprep.subr.bf16.mxu0 0
    %1061 = vmatpush1.bf16.msra.mxu0 0
    %1062 = vmatprep.subr.bf16.mxu0 0
    %1063 = vmatpush1.bf16.msra.mxu0 0
    %1064 = vmatprep.mubr.bf16.mxu0 0
    %1065 = vmatmul.mubr.bf16.gmra.mrb[0].mxu0 %v1023
    %v1066 = vpop.f32.mrb[0].mxu0
    %v1067 = vadd.f32 0.0, %v1066
    %v1068 = vpop.f32.mrb[0].mxu0
    %v1069 = vpop.f32.mrb[0].mxu0
    %v1070 = vpop.f32.mrb[0].mxu0
    %1071 = vdwg.mxu0
    %s1072 = scalar_lea.vmem [#allocation11], 112
    %v1073 = vld [vmem:[%s1072] sm:$0xff]
    %v1074 = vrot.slane %v1067, 4
    %v1075 = vadd.f32 %v1067, %v1074
    %v1076 = vrot.slane %v1075, 2
    %v1077 = vadd.f32 %v1075, %v1076
    %v1078 = vrot.slane %v1077, 1
    %v1079 = vadd.f32 %v1077, %v1078
    %v1080 = vmul.f32 %v1067, %v1067
    %v1081 = vrot.slane %v1080, 4
    %v1082 = vadd.f32 %v1080, %v1081
    %v1083 = vrot.slane %v1082, 2
    %v1084 = vadd.f32 %v1082, %v1083
    %v1085 = vrot.slane %v1084, 1
    %v1086 = vadd.f32 %v1084, %v1085
    %v1087 = vmul.f32 %v1079, 0.125
    %v1088 = vmul.f32 %v1086, 0.125
    %v1089 = vmul.f32 %v1087, %v1087
    %v1090 = vsub.f32 %v1088, %v1089
    %v1091 = vmax.f32 %v1090, 0.0
    %v1092 = vadd.f32 %v1091, 1e-05
    %v1093 = vrsqrt.pop %v1092
    %v1094 = vmul.f32 %v1093, %v1073
    %v1095 = vmul.f32 %v1087, %v1094
    %v1097 = vrot.slane %v1095, 7
    %v1099 = vsub.f32 %v1073, %v1097
    %v1100 = vlaneseq
    %v1101 = vshrl.u32 %v1100, 7
    %v1102 = vsub.s32 0, %v1101
    %v1103 = vrot.slane %v1094, %v1102
    %v1104 = vmul.f32 %v1067, %v1103
    %v1105 = vlaneseq
    %v1106 = vshrl.u32 %v1105, 7
    %v1107 = vsub.s32 1, %v1106
    %v1108 = vrot.slane %v1099, %v1107
    %v1109 = vadd.f32 %v1104, %v1108
    %v1110 = vtanh.pop %v1109
    %v1111 = vlaneseq
    %v1112 = vshrl.u32 %v1111, 7
    %v1113 = vsub.s32 2, %v1112
    %v1114 = vrot.slane %v1073, %v1113
    %v1115 = vmul.f32 %v1110, %v1114
    %1116 = vst [vmem:[#allocation13] sm:$0xff] %v1115
    // Predicated region
    $region38: #{tpu_custom_call.1} parent=1 // pred_check
      _
    $region39: #{tpu_custom_call.1} parent=1 // pred_check_branch
      %1118 = sbr.rel (0) target = $region41
    $region40: #{tpu_custom_call.1} parent=1 // pred_region
      %s1120 = ssub.s32 128, 128
      %1121 = vsyncadd [#allocation10], %s1120
      %s1123 = sshll.u32 [#allocation13], 4
      %s1124 = int_to_ptr.vmem [resolvable:$true] %s1123
      %1126 = dma.vmem_to_hbm [thread:$0]  %s1124, 128, %s5, [#allocation10]
    $region41: #{tpu_custom_call.1} parent=1 // pred_fallthru
      _
    // Predicated region
    $region42: #{tpu_custom_call.1} parent=1 // pred_check
      _
    $region43: #{tpu_custom_call.1} parent=1 // pred_check_branch
      %1128 = sbr.rel (0) target = $region45
    $region44: #{tpu_custom_call.1} parent=1 // pred_region
      %1129 = dma.done [#allocation10], 128
    $region45: #{tpu_custom_call.1} parent=1 // pred_fallthru
      _
    %1130 = vsyncpa [#allocation9], 1
    %1131 = vsyncpa [#allocation12], 1
    %1132 = vsyncpa [#allocation10], 1
  %1133 = vsyncmov [#allocation5]
  %s1134 = vpop.sfrf %1133
  %p1135 = scmp.eq.s32.totalorder %s1134, 0
  %p1136 = pneg %p1135
  %1138 = shalt.err (%p1136)
  %s1139 = scalar_lea.sflag [#allocation5], 1
  %1140 = vsyncmov %s1139
  %s1141 = vpop.sfrf %1140
  %p1142 = scmp.eq.s32.totalorder %s1141, 0
  %p1143 = pneg %p1142
  %1145 = shalt.err (%p1143)
  %1146 = vsyncmov [#allocation6]
  %s1147 = vpop.sfrf %1146
  %p1148 = scmp.eq.s32.totalorder %s1147, 0
  %p1149 = pneg %p1148
  %1151 = shalt.err (%p1149)
  %s1152 = scalar_lea.sflag [#allocation6], 1
  %1153 = vsyncmov %s1152
  %s1154 = vpop.sfrf %1153
  %p1155 = scmp.eq.s32.totalorder %s1154, 0
  %p1156 = pneg %p1155
  %1158 = shalt.err (%p1156)
  %s1159 = scalar_lea.sflag [#allocation6], 2
  %1160 = vsyncmov %s1159
  %s1161 = vpop.sfrf %1160
  %p1162 = scmp.eq.s32.totalorder %s1161, 0
  %p1163 = pneg %p1162
  %1165 = shalt.err (%p1163)
  %1166 = vsyncmov [#allocation7]
  %s1167 = vpop.sfrf %1166
  %p1168 = scmp.eq.s32.totalorder %s1167, 0
  %p1169 = pneg %p1168
  %1171 = shalt.err (%p1169)
  %s1172 = scalar_lea.sflag [#allocation7], 1
  %1173 = vsyncmov %s1172
  %s1174 = vpop.sfrf %1173
  %p1175 = scmp.eq.s32.totalorder %s1174, 0
  %p1176 = pneg %p1175
  %1178 = shalt.err (%p1176)
  %s1179 = scalar_lea.sflag [#allocation7], 2
  %1180 = vsyncmov %s1179
  %s1181 = vpop.sfrf %1180
  %p1182 = scmp.eq.s32.totalorder %s1181, 0
  %p1183 = pneg %p1182
  %1185 = shalt.err (%p1183)

</llo_original>
